<compile_context>
chip_gen: v5e
topology: v5e:2x2
jax: 0.10.0
libtpu: 0.0.40
codegen_flags: <defaults>
</compile_context>

<pallas_src>
import functools
from math import sqrt

import jax
import jax.numpy as jnp
from jax import lax
from jax.experimental import pallas as pl
from jax.experimental.pallas import tpu as pltpu


# ----------------------------------------------------------------------------
# Fused QKV projection + multi-head attention + output projection
# grid = (B, L // tl);  K/V projected once per batch into VMEM scratch.
# ----------------------------------------------------------------------------
def _attention_layer_kernel(
    xq_ref,                 # (tl, d_model) bf16
    xk_ref, xv_ref,         # (S, d_model)  bf16
    wq_ref, wk_ref,         # (H, d_model, E)
    wv_ref,                 # (H, d_model, Dv)
    bq_ref, bk_ref,         # (H, 1, E)
    bv_ref,                 # (H, 1, Dv)
    wo_ref,                 # (H, Dv, d_model)
    bo_ref,                 # (1, d_model)
    o_ref,                  # (tl, d_model)
    k_scratch,              # (H, S, E)  bf16  VMEM scratch
    v_scratch,              # (H, S, Dv) bf16  VMEM scratch
    *, n_heads, scale,
):
    lt = pl.program_id(1)

    # Project K/V once per batch (first L tile); reuse from scratch afterwards.
    @pl.when(lt == 0)
    def _():
        xk = xk_ref[...]
        xv = xv_ref[...]
        for h in range(n_heads):
            kh = jnp.dot(xk, wk_ref[h], preferred_element_type=jnp.float32)
            kh = kh + bk_ref[h].astype(jnp.float32)
            k_scratch[h] = kh.astype(jnp.bfloat16)
            vh = jnp.dot(xv, wv_ref[h], preferred_element_type=jnp.float32)
            vh = vh + bv_ref[h].astype(jnp.float32)
            v_scratch[h] = vh.astype(jnp.bfloat16)

    xq = xq_ref[...]
    # Fused output projection accumulator (f32); bias added once, outside the head loop.
    acc = jnp.broadcast_to(bo_ref[...].astype(jnp.float32), o_ref.shape)

    for h in range(n_heads):
        # Q projection; 1/sqrt(E) softmax scale folded into the f32 accumulator.
        qh = jnp.dot(xq, wq_ref[h], preferred_element_type=jnp.float32)
        qh = ((qh + bq_ref[h].astype(jnp.float32)) * scale).astype(jnp.bfloat16)  # (tl, E)
        kh = k_scratch[h]                                                          # (S, E)
        vh = v_scratch[h]                                                          # (S, Dv)

        # scores: contract the trailing E dims directly (no explicit transpose).
        s = lax.dot_general(qh, kh, (((1,), (1,)), ((), ())),
                            preferred_element_type=jnp.float32)                    # (tl, S) f32
        m = jnp.max(s, axis=-1, keepdims=True)
        p = jnp.exp(s - m)                                                         # f32
        l = jnp.sum(p, axis=-1, keepdims=True)
        oh = lax.dot_general(p.astype(jnp.bfloat16), vh, (((1,), (0,)), ((), ())),
                             preferred_element_type=jnp.float32)                   # (tl, Dv) f32
        # Deferred softmax normalization on the small (tl, Dv) tile (EUP reciprocal),
        # then fold this head's contribution straight into the output projection.
        ctx = (oh * pl.reciprocal(l, approx=True)).astype(jnp.bfloat16)
        acc = acc + jnp.dot(ctx, wo_ref[h], preferred_element_type=jnp.float32)

    # Single unmasked, lane-dense store.
    o_ref[...] = acc.astype(o_ref.dtype)


def fused_attention_layer(queries, keys, values,
                          wq, bq, wk, bk, wv, bv, wo, bo,
                          n_heads, *, max_l_tile=512):
    """queries: (B, L, d_model), keys/values: (B, S, d_model) -> (B, L, d_model) bf16."""
    B, L, d_model = queries.shape
    _, S, _ = keys.shape
    H = n_heads
    HE = wq.shape[1]
    HD = wv.shape[1]
    E = HE // H
    Dv = HD // H
    scale = 1.0 / sqrt(E)

    # L tiling (flash-style S tiling left as a TODO above).
    tl = L if L <= max_l_tile else max_l_tile
    if L % tl != 0:
        tl = L  # TODO(synk): pad/mask a ragged final L tile instead of one full-L block.
    n_lt = L // tl

    # Host-side re-layout of the projection weights to per-head form.
    wq_h = jnp.transpose(wq.reshape(d_model, H, E), (1, 0, 2))   # (H, d_model, E)
    wk_h = jnp.transpose(wk.reshape(d_model, H, E), (1, 0, 2))   # (H, d_model, E)
    wv_h = jnp.transpose(wv.reshape(d_model, H, Dv), (1, 0, 2))  # (H, d_model, Dv)
    bq_h = bq.reshape(H, 1, E)
    bk_h = bk.reshape(H, 1, E)
    bv_h = bv.reshape(H, 1, Dv)
    wo_h = wo.reshape(H, Dv, d_model)                            # (H, Dv, d_model)
    bo_2 = bo.reshape(1, d_model)

    kernel = functools.partial(_attention_layer_kernel, n_heads=H, scale=scale)

    # Explicit VMEM budget from the actual block sizes (double-buffered blocks + scratch
    # + f32 temporaries), with headroom, clamped to the smallest physical VMEM (v7x).
    bpe = 2  # bf16
    buf_bytes = 2 * bpe * (2 * tl * d_model + 2 * S * d_model)                  # q/out + k/v blocks
    w_bytes = 2 * bpe * (2 * d_model * HE + d_model * HD + HD * d_model
                         + 2 * HE + HD + d_model)                               # resident weights/biases
    scr_bytes = bpe * (H * S * E + H * S * Dv)                                  # K/V scratch
    tmp_bytes = 4 * (tl * S + 2 * tl * d_model + tl * (E + Dv) + S * (E + Dv))  # f32 temporaries
    vmem_limit = int(min(64 * 2 ** 20,
                         max(16 * 2 ** 20,
                             2 * (buf_bytes + w_bytes + scr_bytes + tmp_bytes))))

    flops = (2 * B * L * d_model * HE                # Q projection
             + 2 * B * S * d_model * (HE + HD)       # K/V projections (once per batch)
             + 2 * B * H * L * S * (E + Dv)          # QK^T + PV
             + 2 * B * L * HD * d_model)             # output projection
    bytes_accessed = (2 * (2 * B * L * d_model + 2 * B * S * d_model)
                      + 2 * (d_model * (2 * HE + HD) + HD * d_model + 2 * HE + HD + d_model))
    cost = pl.CostEstimate(flops=flops,
                           transcendentals=B * H * L * (S + 1),
                           bytes_accessed=bytes_accessed)

    return pl.pallas_call(
        kernel,
        out_shape=jax.ShapeDtypeStruct((B, L, d_model), jnp.bfloat16),
        grid=(B, n_lt),
        in_specs=[
            pl.BlockSpec((None, tl, d_model), lambda b, lt: (b, lt, 0)),   # queries (L-tiled)
            pl.BlockSpec((None, S, d_model), lambda b, lt: (b, 0, 0)),     # keys   (per batch)
            pl.BlockSpec((None, S, d_model), lambda b, lt: (b, 0, 0)),     # values (per batch)
            pl.BlockSpec((H, d_model, E), lambda b, lt: (0, 0, 0)),        # wq (resident)
            pl.BlockSpec((H, d_model, E), lambda b, lt: (0, 0, 0)),        # wk (resident)
            pl.BlockSpec((H, d_model, Dv), lambda b, lt: (0, 0, 0)),       # wv (resident)
            pl.BlockSpec((H, 1, E), lambda b, lt: (0, 0, 0)),              # bq
            pl.BlockSpec((H, 1, E), lambda b, lt: (0, 0, 0)),              # bk
            pl.BlockSpec((H, 1, Dv), lambda b, lt: (0, 0, 0)),             # bv
            pl.BlockSpec((H, Dv, d_model), lambda b, lt: (0, 0, 0)),       # wo (resident)
            pl.BlockSpec((1, d_model), lambda b, lt: (0, 0)),              # bo
        ],
        out_specs=pl.BlockSpec((None, tl, d_model), lambda b, lt: (b, lt, 0)),
        scratch_shapes=[
            pltpu.VMEM((H, S, E), jnp.bfloat16),    # projected K, reused across L tiles
            pltpu.VMEM((H, S, Dv), jnp.bfloat16),   # projected V, reused across L tiles
        ],
        compiler_params=pltpu.CompilerParams(
            dimension_semantics=("parallel", "arbitrary"),
            vmem_limit_bytes=vmem_limit),
        cost_estimate=cost,
    )(queries, keys, values, wq_h, wk_h, wv_h, bq_h, bk_h, bv_h, wo_h, bo_2)


# ----------------------------------------------------------------------------
# AttentionLayer forward
# ----------------------------------------------------------------------------
def attention_layer_forward(params, queries, keys, values, n_heads):
    out = fused_attention_layer(
        queries.astype(jnp.bfloat16),
        keys.astype(jnp.bfloat16),
        values.astype(jnp.bfloat16),
        params["wq"], params["bq"],
        params["wk"], params["bk"],
        params["wv"], params["bv"],
        params["wo"], params["bo"],
        n_heads,
    )
    return out, None   # attn is None when output_attn=False


# ----------------------------------------------------------------------------
# Pure-JAX reference (f32) for a sanity check
# ----------------------------------------------------------------------------
def _reference_forward(params, queries, keys, values, n_heads):
    f32 = jnp.float32
    q = queries.astype(f32) @ params["wq"].astype(f32) + params["bq"].astype(f32)
    k = keys.astype(f32) @ params["wk"].astype(f32) + params["bk"].astype(f32)
    v = values.astype(f32) @ params["wv"].astype(f32) + params["bv"].astype(f32)
    B, L, HE = q.shape
    S = k.shape[1]
    H = n_heads
    E = HE // H
    Dv = v.shape[-1] // H
    q = q.reshape(B, L, H, E)
    k = k.reshape(B, S, H, E)
    v = v.reshape(B, S, H, Dv)
    s = jnp.einsum("blhe,bshe->bhls", q, k) / sqrt(E)
    p = jax.nn.softmax(s, axis=-1)
    ctx = jnp.einsum("bhls,bshd->blhd", p, v).reshape(B, L, H * Dv)
    out = ctx @ params["wo"].astype(f32) + params["bo"].astype(f32)
    return out


# ----------------------------------------------------------------------------
# Deterministic parameter init (shapes from the PyTorch module __init__)
# ----------------------------------------------------------------------------
def init_params(key, d_model, d_qk, d_v, n_heads):
    keys = jax.random.split(key, 8)

    def w(k, fan_in, fan_out):
        return (jax.random.normal(k, (fan_in, fan_out), jnp.float32) * 0.02).astype(jnp.bfloat16)

    def b(k, fan_out):
        return (jax.random.normal(k, (fan_out,), jnp.float32) * 0.02).astype(jnp.bfloat16)

    return {
        "wq": w(keys[0], d_model, d_qk * n_heads), "bq": b(keys[1], d_qk * n_heads),
        "wk": w(keys[2], d_model, d_qk * n_heads), "bk": b(keys[3], d_qk * n_heads),
        "wv": w(keys[4], d_model, d_v * n_heads),  "bv": b(keys[5], d_v * n_heads),
        "wo": w(keys[6], d_v * n_heads, d_model),  "bo": b(keys[7], d_model),
    }


if __name__ == "__main__":
    B, L, S = 2, 8, 8
    d_model, n_heads = 32, 4
    d_qk = d_v = d_model // n_heads  # 8

    root = jax.random.PRNGKey(0)
    k_params, k_q, k_k, k_v = jax.random.split(root, 4)

    params = init_params(k_params, d_model, d_qk, d_v, n_heads)
    queries = jax.random.normal(k_q, (B, L, d_model), jnp.float32).astype(jnp.bfloat16)
    keys = jax.random.normal(k_k, (B, S, d_model), jnp.float32).astype(jnp.bfloat16)
    values = jax.random.normal(k_v, (B, S, d_model), jnp.float32).astype(jnp.bfloat16)

    out, attn = attention_layer_forward(params, queries, keys, values, n_heads)
    out = jax.block_until_ready(out)

    assert out.shape == (B, L, d_model), out.shape
    assert out.dtype == jnp.bfloat16
    assert attn is None

    ref = _reference_forward(params, queries, keys, values, n_heads)
    assert bool(jnp.allclose(out.astype(jnp.float32), ref, atol=5e-2, rtol=5e-2)), (
        "kernel output diverges from f32 reference")

    print("KERNEL_OK")
</pallas_src>

<mosaic_0001>
module attributes {stable_mosaic.version = 11 : i64} {
  func.func @_attention_layer_kernel(%arg0: i32, %arg1: i32, %arg2: memref<1x8x32xbf16, #tpu.memory_space<vmem>>, %arg3: memref<1x8x32xbf16, #tpu.memory_space<vmem>>, %arg4: memref<1x8x32xbf16, #tpu.memory_space<vmem>>, %arg5: memref<4x32x8xbf16, #tpu.memory_space<vmem>>, %arg6: memref<4x32x8xbf16, #tpu.memory_space<vmem>>, %arg7: memref<4x32x8xbf16, #tpu.memory_space<vmem>>, %arg8: memref<4x1x8xbf16, #tpu.memory_space<vmem>>, %arg9: memref<4x1x8xbf16, #tpu.memory_space<vmem>>, %arg10: memref<4x1x8xbf16, #tpu.memory_space<vmem>>, %arg11: memref<4x8x32xbf16, #tpu.memory_space<vmem>>, %arg12: memref<1x32xbf16, #tpu.memory_space<vmem>>, %arg13: memref<1x8x32xbf16, #tpu.memory_space<vmem>>, %arg14: memref<4x8x8xbf16, #tpu.memory_space<vmem>>, %arg15: memref<4x8x8xbf16, #tpu.memory_space<vmem>>) attributes {dimension_semantics = [#tpu.dimension_semantics<parallel>, #tpu.dimension_semantics<arbitrary>], iteration_bounds = array<i64: 2, 1>, scalar_prefetch = 0 : i64, scratch_operands = 2 : i64, tpu.core_type = #tpu.core_type<tc>, window_params = [{transform_indices = @transform_0, window_bounds = array<i64: 1, 8, 32>}, {transform_indices = @transform_1, window_bounds = array<i64: 1, 8, 32>}, {transform_indices = @transform_2, window_bounds = array<i64: 1, 8, 32>}, {pipeline_mode = #tpu.pipeline_mode<synchronous>, transform_indices = @transform_3, window_bounds = array<i64: 4, 32, 8>}, {pipeline_mode = #tpu.pipeline_mode<synchronous>, transform_indices = @transform_4, window_bounds = array<i64: 4, 32, 8>}, {pipeline_mode = #tpu.pipeline_mode<synchronous>, transform_indices = @transform_5, window_bounds = array<i64: 4, 32, 8>}, {pipeline_mode = #tpu.pipeline_mode<synchronous>, transform_indices = @transform_6, window_bounds = array<i64: 4, 1, 8>}, {pipeline_mode = #tpu.pipeline_mode<synchronous>, transform_indices = @transform_7, window_bounds = array<i64: 4, 1, 8>}, {pipeline_mode = #tpu.pipeline_mode<synchronous>, transform_indices = @transform_8, window_bounds = array<i64: 4, 1, 8>}, {pipeline_mode = #tpu.pipeline_mode<synchronous>, transform_indices = @transform_9, window_bounds = array<i64: 4, 8, 32>}, {pipeline_mode = #tpu.pipeline_mode<synchronous>, transform_indices = @transform_10, window_bounds = array<i64: 1, 32>}, {transform_indices = @transform_11, window_bounds = array<i64: 1, 8, 32>}]} {
    %c0_i32 = arith.constant 0 : i32
    %0 = arith.cmpi eq, %arg1, %c0_i32 : i32
    %1 = arith.extui %0 : i1 to i32
    %c0_i32_0 = arith.constant 0 : i32
    %2 = arith.cmpi ne, %1, %c0_i32_0 : i32
    scf.if %2 {
      %c0_92 = arith.constant 0 : index
      %c0_93 = arith.constant 0 : index
      %c0_94 = arith.constant 0 : index
      %145 = vector.load %arg3[%c0_92, %c0_93, %c0_94] : memref<1x8x32xbf16, #tpu.memory_space<vmem>>, vector<1x8x32xbf16>
      %146 = vector.shape_cast %145 : vector<1x8x32xbf16> to vector<8x32xbf16>
      %c0_95 = arith.constant 0 : index
      %c0_96 = arith.constant 0 : index
      %c0_97 = arith.constant 0 : index
      %147 = vector.load %arg4[%c0_95, %c0_96, %c0_97] : memref<1x8x32xbf16, #tpu.memory_space<vmem>>, vector<1x8x32xbf16>
      %148 = vector.shape_cast %147 : vector<1x8x32xbf16> to vector<8x32xbf16>
      %c0_98 = arith.constant 0 : index
      %c0_99 = arith.constant 0 : index
      %c0_100 = arith.constant 0 : index
      %149 = vector.load %arg6[%c0_98, %c0_99, %c0_100] : memref<4x32x8xbf16, #tpu.memory_space<vmem>>, vector<1x32x8xbf16>
      %150 = vector.shape_cast %149 : vector<1x32x8xbf16> to vector<32x8xbf16>
      %cst_101 = arith.constant dense<0.000000e+00> : vector<8x8xf32>
      %151 = tpu.matmul %146, %150, %cst_101 {dimension_numbers = #tpu.dot_dimension_numbers<[1], [0], [0], [1], [0, 0, 1, 1], [], []>} : vector<8x32xbf16>, vector<32x8xbf16>, vector<8x8xf32> -> vector<8x8xf32>
      %c0_102 = arith.constant 0 : index
      %c0_103 = arith.constant 0 : index
      %c0_104 = arith.constant 0 : index
      %152 = vector.load %arg9[%c0_102, %c0_103, %c0_104] : memref<4x1x8xbf16, #tpu.memory_space<vmem>>, vector<1x1x8xbf16>
      %153 = vector.shape_cast %152 : vector<1x1x8xbf16> to vector<1x8xbf16>
      %154 = arith.extf %153 : vector<1x8xbf16> to vector<1x8xf32>
      %155 = vector.broadcast %154 : vector<1x8xf32> to vector<8x8xf32>
      %156 = arith.addf %151, %155 : vector<8x8xf32>
      %157 = arith.truncf %156 : vector<8x8xf32> to vector<8x8xbf16>
      %c0_105 = arith.constant 0 : index
      %c0_106 = arith.constant 0 : index
      %c0_107 = arith.constant 0 : index
      %158 = vector.load %arg14[%c0_105, %c0_106, %c0_107] : memref<4x8x8xbf16, #tpu.memory_space<vmem>>, vector<1x8x8xbf16>
      %159 = vector.shape_cast %158 : vector<1x8x8xbf16> to vector<8x8xbf16>
      %160 = vector.shape_cast %157 : vector<8x8xbf16> to vector<1x8x8xbf16>
      tpu.vector_store %arg14[%c0_105, %c0_106, %c0_107], %160 {strides = array<i32>} : memref<4x8x8xbf16, #tpu.memory_space<vmem>>, vector<1x8x8xbf16>,
      %c0_108 = arith.constant 0 : index
      %c0_109 = arith.constant 0 : index
      %c0_110 = arith.constant 0 : index
      %161 = vector.load %arg7[%c0_108, %c0_109, %c0_110] : memref<4x32x8xbf16, #tpu.memory_space<vmem>>, vector<1x32x8xbf16>
      %162 = vector.shape_cast %161 : vector<1x32x8xbf16> to vector<32x8xbf16>
      %cst_111 = arith.constant dense<0.000000e+00> : vector<8x8xf32>
      %163 = tpu.matmul %148, %162, %cst_111 {dimension_numbers = #tpu.dot_dimension_numbers<[1], [0], [0], [1], [0, 0, 1, 1], [], []>} : vector<8x32xbf16>, vector<32x8xbf16>, vector<8x8xf32> -> vector<8x8xf32>
      %c0_112 = arith.constant 0 : index
      %c0_113 = arith.constant 0 : index
      %c0_114 = arith.constant 0 : index
      %164 = vector.load %arg10[%c0_112, %c0_113, %c0_114] : memref<4x1x8xbf16, #tpu.memory_space<vmem>>, vector<1x1x8xbf16>
      %165 = vector.shape_cast %164 : vector<1x1x8xbf16> to vector<1x8xbf16>
      %166 = arith.extf %165 : vector<1x8xbf16> to vector<1x8xf32>
      %167 = vector.broadcast %166 : vector<1x8xf32> to vector<8x8xf32>
      %168 = arith.addf %163, %167 : vector<8x8xf32>
      %169 = arith.truncf %168 : vector<8x8xf32> to vector<8x8xbf16>
      %c0_115 = arith.constant 0 : index
      %c0_116 = arith.constant 0 : index
      %c0_117 = arith.constant 0 : index
      %170 = vector.load %arg15[%c0_115, %c0_116, %c0_117] : memref<4x8x8xbf16, #tpu.memory_space<vmem>>, vector<1x8x8xbf16>
      %171 = vector.shape_cast %170 : vector<1x8x8xbf16> to vector<8x8xbf16>
      %172 = vector.shape_cast %169 : vector<8x8xbf16> to vector<1x8x8xbf16>
      tpu.vector_store %arg15[%c0_115, %c0_116, %c0_117], %172 {strides = array<i32>} : memref<4x8x8xbf16, #tpu.memory_space<vmem>>, vector<1x8x8xbf16>,
      %c1_118 = arith.constant 1 : index
      %c0_119 = arith.constant 0 : index
      %c0_120 = arith.constant 0 : index
      %173 = vector.load %arg6[%c1_118, %c0_119, %c0_120] : memref<4x32x8xbf16, #tpu.memory_space<vmem>>, vector<1x32x8xbf16>
      %174 = vector.shape_cast %173 : vector<1x32x8xbf16> to vector<32x8xbf16>
      %cst_121 = arith.constant dense<0.000000e+00> : vector<8x8xf32>
      %175 = tpu.matmul %146, %174, %cst_121 {dimension_numbers = #tpu.dot_dimension_numbers<[1], [0], [0], [1], [0, 0, 1, 1], [], []>} : vector<8x32xbf16>, vector<32x8xbf16>, vector<8x8xf32> -> vector<8x8xf32>
      %c1_122 = arith.constant 1 : index
      %c0_123 = arith.constant 0 : index
      %c0_124 = arith.constant 0 : index
      %176 = vector.load %arg9[%c1_122, %c0_123, %c0_124] : memref<4x1x8xbf16, #tpu.memory_space<vmem>>, vector<1x1x8xbf16>
      %177 = vector.shape_cast %176 : vector<1x1x8xbf16> to vector<1x8xbf16>
      %178 = arith.extf %177 : vector<1x8xbf16> to vector<1x8xf32>
      %179 = vector.broadcast %178 : vector<1x8xf32> to vector<8x8xf32>
      %180 = arith.addf %175, %179 : vector<8x8xf32>
      %181 = arith.truncf %180 : vector<8x8xf32> to vector<8x8xbf16>
      %c1_125 = arith.constant 1 : index
      %c0_126 = arith.constant 0 : index
      %c0_127 = arith.constant 0 : index
      %182 = vector.load %arg14[%c1_125, %c0_126, %c0_127] : memref<4x8x8xbf16, #tpu.memory_space<vmem>>, vector<1x8x8xbf16>
      %183 = vector.shape_cast %182 : vector<1x8x8xbf16> to vector<8x8xbf16>
      %184 = vector.shape_cast %181 : vector<8x8xbf16> to vector<1x8x8xbf16>
      tpu.vector_store %arg14[%c1_125, %c0_126, %c0_127], %184 {strides = array<i32>} : memref<4x8x8xbf16, #tpu.memory_space<vmem>>, vector<1x8x8xbf16>,
      %c1_128 = arith.constant 1 : index
      %c0_129 = arith.constant 0 : index
      %c0_130 = arith.constant 0 : index
      %185 = vector.load %arg7[%c1_128, %c0_129, %c0_130] : memref<4x32x8xbf16, #tpu.memory_space<vmem>>, vector<1x32x8xbf16>
      %186 = vector.shape_cast %185 : vector<1x32x8xbf16> to vector<32x8xbf16>
      %cst_131 = arith.constant dense<0.000000e+00> : vector<8x8xf32>
      %187 = tpu.matmul %148, %186, %cst_131 {dimension_numbers = #tpu.dot_dimension_numbers<[1], [0], [0], [1], [0, 0, 1, 1], [], []>} : vector<8x32xbf16>, vector<32x8xbf16>, vector<8x8xf32> -> vector<8x8xf32>
      %c1_132 = arith.constant 1 : index
      %c0_133 = arith.constant 0 : index
      %c0_134 = arith.constant 0 : index
      %188 = vector.load %arg10[%c1_132, %c0_133, %c0_134] : memref<4x1x8xbf16, #tpu.memory_space<vmem>>, vector<1x1x8xbf16>
      %189 = vector.shape_cast %188 : vector<1x1x8xbf16> to vector<1x8xbf16>
      %190 = arith.extf %189 : vector<1x8xbf16> to vector<1x8xf32>
      %191 = vector.broadcast %190 : vector<1x8xf32> to vector<8x8xf32>
      %192 = arith.addf %187, %191 : vector<8x8xf32>
      %193 = arith.truncf %192 : vector<8x8xf32> to vector<8x8xbf16>
      %c1_135 = arith.constant 1 : index
      %c0_136 = arith.constant 0 : index
      %c0_137 = arith.constant 0 : index
      %194 = vector.load %arg15[%c1_135, %c0_136, %c0_137] : memref<4x8x8xbf16, #tpu.memory_space<vmem>>, vector<1x8x8xbf16>
      %195 = vector.shape_cast %194 : vector<1x8x8xbf16> to vector<8x8xbf16>
      %196 = vector.shape_cast %193 : vector<8x8xbf16> to vector<1x8x8xbf16>
      tpu.vector_store %arg15[%c1_135, %c0_136, %c0_137], %196 {strides = array<i32>} : memref<4x8x8xbf16, #tpu.memory_space<vmem>>, vector<1x8x8xbf16>,
      %c2_138 = arith.constant 2 : index
      %c0_139 = arith.constant 0 : index
      %c0_140 = arith.constant 0 : index
      %197 = vector.load %arg6[%c2_138, %c0_139, %c0_140] : memref<4x32x8xbf16, #tpu.memory_space<vmem>>, vector<1x32x8xbf16>
      %198 = vector.shape_cast %197 : vector<1x32x8xbf16> to vector<32x8xbf16>
      %cst_141 = arith.constant dense<0.000000e+00> : vector<8x8xf32>
      %199 = tpu.matmul %146, %198, %cst_141 {dimension_numbers = #tpu.dot_dimension_numbers<[1], [0], [0], [1], [0, 0, 1, 1], [], []>} : vector<8x32xbf16>, vector<32x8xbf16>, vector<8x8xf32> -> vector<8x8xf32>
      %c2_142 = arith.constant 2 : index
      %c0_143 = arith.constant 0 : index
      %c0_144 = arith.constant 0 : index
      %200 = vector.load %arg9[%c2_142, %c0_143, %c0_144] : memref<4x1x8xbf16, #tpu.memory_space<vmem>>, vector<1x1x8xbf16>
      %201 = vector.shape_cast %200 : vector<1x1x8xbf16> to vector<1x8xbf16>
      %202 = arith.extf %201 : vector<1x8xbf16> to vector<1x8xf32>
      %203 = vector.broadcast %202 : vector<1x8xf32> to vector<8x8xf32>
      %204 = arith.addf %199, %203 : vector<8x8xf32>
      %205 = arith.truncf %204 : vector<8x8xf32> to vector<8x8xbf16>
      %c2_145 = arith.constant 2 : index
      %c0_146 = arith.constant 0 : index
      %c0_147 = arith.constant 0 : index
      %206 = vector.load %arg14[%c2_145, %c0_146, %c0_147] : memref<4x8x8xbf16, #tpu.memory_space<vmem>>, vector<1x8x8xbf16>
      %207 = vector.shape_cast %206 : vector<1x8x8xbf16> to vector<8x8xbf16>
      %208 = vector.shape_cast %205 : vector<8x8xbf16> to vector<1x8x8xbf16>
      tpu.vector_store %arg14[%c2_145, %c0_146, %c0_147], %208 {strides = array<i32>} : memref<4x8x8xbf16, #tpu.memory_space<vmem>>, vector<1x8x8xbf16>,
      %c2_148 = arith.constant 2 : index
      %c0_149 = arith.constant 0 : index
      %c0_150 = arith.constant 0 : index
      %209 = vector.load %arg7[%c2_148, %c0_149, %c0_150] : memref<4x32x8xbf16, #tpu.memory_space<vmem>>, vector<1x32x8xbf16>
      %210 = vector.shape_cast %209 : vector<1x32x8xbf16> to vector<32x8xbf16>
      %cst_151 = arith.constant dense<0.000000e+00> : vector<8x8xf32>
      %211 = tpu.matmul %148, %210, %cst_151 {dimension_numbers = #tpu.dot_dimension_numbers<[1], [0], [0], [1], [0, 0, 1, 1], [], []>} : vector<8x32xbf16>, vector<32x8xbf16>, vector<8x8xf32> -> vector<8x8xf32>
      %c2_152 = arith.constant 2 : index
      %c0_153 = arith.constant 0 : index
      %c0_154 = arith.constant 0 : index
      %212 = vector.load %arg10[%c2_152, %c0_153, %c0_154] : memref<4x1x8xbf16, #tpu.memory_space<vmem>>, vector<1x1x8xbf16>
      %213 = vector.shape_cast %212 : vector<1x1x8xbf16> to vector<1x8xbf16>
      %214 = arith.extf %213 : vector<1x8xbf16> to vector<1x8xf32>
      %215 = vector.broadcast %214 : vector<1x8xf32> to vector<8x8xf32>
      %216 = arith.addf %211, %215 : vector<8x8xf32>
      %217 = arith.truncf %216 : vector<8x8xf32> to vector<8x8xbf16>
      %c2_155 = arith.constant 2 : index
      %c0_156 = arith.constant 0 : index
      %c0_157 = arith.constant 0 : index
      %218 = vector.load %arg15[%c2_155, %c0_156, %c0_157] : memref<4x8x8xbf16, #tpu.memory_space<vmem>>, vector<1x8x8xbf16>
      %219 = vector.shape_cast %218 : vector<1x8x8xbf16> to vector<8x8xbf16>
      %220 = vector.shape_cast %217 : vector<8x8xbf16> to vector<1x8x8xbf16>
      tpu.vector_store %arg15[%c2_155, %c0_156, %c0_157], %220 {strides = array<i32>} : memref<4x8x8xbf16, #tpu.memory_space<vmem>>, vector<1x8x8xbf16>,
      %c3_158 = arith.constant 3 : index
      %c0_159 = arith.constant 0 : index
      %c0_160 = arith.constant 0 : index
      %221 = vector.load %arg6[%c3_158, %c0_159, %c0_160] : memref<4x32x8xbf16, #tpu.memory_space<vmem>>, vector<1x32x8xbf16>
      %222 = vector.shape_cast %221 : vector<1x32x8xbf16> to vector<32x8xbf16>
      %cst_161 = arith.constant dense<0.000000e+00> : vector<8x8xf32>
      %223 = tpu.matmul %146, %222, %cst_161 {dimension_numbers = #tpu.dot_dimension_numbers<[1], [0], [0], [1], [0, 0, 1, 1], [], []>} : vector<8x32xbf16>, vector<32x8xbf16>, vector<8x8xf32> -> vector<8x8xf32>
      %c3_162 = arith.constant 3 : index
      %c0_163 = arith.constant 0 : index
      %c0_164 = arith.constant 0 : index
      %224 = vector.load %arg9[%c3_162, %c0_163, %c0_164] : memref<4x1x8xbf16, #tpu.memory_space<vmem>>, vector<1x1x8xbf16>
      %225 = vector.shape_cast %224 : vector<1x1x8xbf16> to vector<1x8xbf16>
      %226 = arith.extf %225 : vector<1x8xbf16> to vector<1x8xf32>
      %227 = vector.broadcast %226 : vector<1x8xf32> to vector<8x8xf32>
      %228 = arith.addf %223, %227 : vector<8x8xf32>
      %229 = arith.truncf %228 : vector<8x8xf32> to vector<8x8xbf16>
      %c3_165 = arith.constant 3 : index
      %c0_166 = arith.constant 0 : index
      %c0_167 = arith.constant 0 : index
      %230 = vector.load %arg14[%c3_165, %c0_166, %c0_167] : memref<4x8x8xbf16, #tpu.memory_space<vmem>>, vector<1x8x8xbf16>
      %231 = vector.shape_cast %230 : vector<1x8x8xbf16> to vector<8x8xbf16>
      %232 = vector.shape_cast %229 : vector<8x8xbf16> to vector<1x8x8xbf16>
      tpu.vector_store %arg14[%c3_165, %c0_166, %c0_167], %232 {strides = array<i32>} : memref<4x8x8xbf16, #tpu.memory_space<vmem>>, vector<1x8x8xbf16>,
      %c3_168 = arith.constant 3 : index
      %c0_169 = arith.constant 0 : index
      %c0_170 = arith.constant 0 : index
      %233 = vector.load %arg7[%c3_168, %c0_169, %c0_170] : memref<4x32x8xbf16, #tpu.memory_space<vmem>>, vector<1x32x8xbf16>
      %234 = vector.shape_cast %233 : vector<1x32x8xbf16> to vector<32x8xbf16>
      %cst_171 = arith.constant dense<0.000000e+00> : vector<8x8xf32>
      %235 = tpu.matmul %148, %234, %cst_171 {dimension_numbers = #tpu.dot_dimension_numbers<[1], [0], [0], [1], [0, 0, 1, 1], [], []>} : vector<8x32xbf16>, vector<32x8xbf16>, vector<8x8xf32> -> vector<8x8xf32>
      %c3_172 = arith.constant 3 : index
      %c0_173 = arith.constant 0 : index
      %c0_174 = arith.constant 0 : index
      %236 = vector.load %arg10[%c3_172, %c0_173, %c0_174] : memref<4x1x8xbf16, #tpu.memory_space<vmem>>, vector<1x1x8xbf16>
      %237 = vector.shape_cast %236 : vector<1x1x8xbf16> to vector<1x8xbf16>
      %238 = arith.extf %237 : vector<1x8xbf16> to vector<1x8xf32>
      %239 = vector.broadcast %238 : vector<1x8xf32> to vector<8x8xf32>
      %240 = arith.addf %235, %239 : vector<8x8xf32>
      %241 = arith.truncf %240 : vector<8x8xf32> to vector<8x8xbf16>
      %c3_175 = arith.constant 3 : index
      %c0_176 = arith.constant 0 : index
      %c0_177 = arith.constant 0 : index
      %242 = vector.load %arg15[%c3_175, %c0_176, %c0_177] : memref<4x8x8xbf16, #tpu.memory_space<vmem>>, vector<1x8x8xbf16>
      %243 = vector.shape_cast %242 : vector<1x8x8xbf16> to vector<8x8xbf16>
      %244 = vector.shape_cast %241 : vector<8x8xbf16> to vector<1x8x8xbf16>
      tpu.vector_store %arg15[%c3_175, %c0_176, %c0_177], %244 {strides = array<i32>} : memref<4x8x8xbf16, #tpu.memory_space<vmem>>, vector<1x8x8xbf16>,
    } else {
    }
    %c0 = arith.constant 0 : index
    %c0_1 = arith.constant 0 : index
    %c0_2 = arith.constant 0 : index
    %3 = vector.load %arg2[%c0, %c0_1, %c0_2] : memref<1x8x32xbf16, #tpu.memory_space<vmem>>, vector<1x8x32xbf16>
    %4 = vector.shape_cast %3 : vector<1x8x32xbf16> to vector<8x32xbf16>
    %c0_3 = arith.constant 0 : index
    %c0_4 = arith.constant 0 : index
    %5 = vector.load %arg12[%c0_3, %c0_4] : memref<1x32xbf16, #tpu.memory_space<vmem>>, vector<1x32xbf16>
    %6 = arith.extf %5 : vector<1x32xbf16> to vector<1x32xf32>
    %7 = vector.shape_cast %6 : vector<1x32xf32> to vector<1x32xf32>
    %8 = vector.broadcast %7 : vector<1x32xf32> to vector<8x32xf32>
    %c0_5 = arith.constant 0 : index
    %c0_6 = arith.constant 0 : index
    %c0_7 = arith.constant 0 : index
    %9 = vector.load %arg5[%c0_5, %c0_6, %c0_7] : memref<4x32x8xbf16, #tpu.memory_space<vmem>>, vector<1x32x8xbf16>
    %10 = vector.shape_cast %9 : vector<1x32x8xbf16> to vector<32x8xbf16>
    %cst = arith.constant dense<0.000000e+00> : vector<8x8xf32>
    %11 = tpu.matmul %4, %10, %cst {dimension_numbers = #tpu.dot_dimension_numbers<[1], [0], [0], [1], [0, 0, 1, 1], [], []>} : vector<8x32xbf16>, vector<32x8xbf16>, vector<8x8xf32> -> vector<8x8xf32>
    %c0_8 = arith.constant 0 : index
    %c0_9 = arith.constant 0 : index
    %c0_10 = arith.constant 0 : index
    %12 = vector.load %arg8[%c0_8, %c0_9, %c0_10] : memref<4x1x8xbf16, #tpu.memory_space<vmem>>, vector<1x1x8xbf16>
    %13 = vector.shape_cast %12 : vector<1x1x8xbf16> to vector<1x8xbf16>
    %14 = arith.extf %13 : vector<1x8xbf16> to vector<1x8xf32>
    %15 = vector.broadcast %14 : vector<1x8xf32> to vector<8x8xf32>
    %16 = arith.addf %11, %15 : vector<8x8xf32>
    %cst_11 = arith.constant 0.353553385 : f32
    %17 = vector.broadcast %cst_11 : f32 to vector<8x8xf32>
    %18 = arith.mulf %16, %17 : vector<8x8xf32>
    %19 = arith.truncf %18 : vector<8x8xf32> to vector<8x8xbf16>
    %c0_12 = arith.constant 0 : index
    %c0_13 = arith.constant 0 : index
    %c0_14 = arith.constant 0 : index
    %20 = vector.load %arg14[%c0_12, %c0_13, %c0_14] : memref<4x8x8xbf16, #tpu.memory_space<vmem>>, vector<1x8x8xbf16>
    %21 = vector.shape_cast %20 : vector<1x8x8xbf16> to vector<8x8xbf16>
    %c0_15 = arith.constant 0 : index
    %c0_16 = arith.constant 0 : index
    %c0_17 = arith.constant 0 : index
    %22 = vector.load %arg15[%c0_15, %c0_16, %c0_17] : memref<4x8x8xbf16, #tpu.memory_space<vmem>>, vector<1x8x8xbf16>
    %23 = vector.shape_cast %22 : vector<1x8x8xbf16> to vector<8x8xbf16>
    %cst_18 = arith.constant dense<0.000000e+00> : vector<8x8xf32>
    %24 = tpu.matmul %19, %21, %cst_18 {dimension_numbers = #tpu.dot_dimension_numbers<[1], [1], [0], [0], [0, 0, 1, 0], [], []>} : vector<8x8xbf16>, vector<8x8xbf16>, vector<8x8xf32> -> vector<8x8xf32>
    %cst_19 = arith.constant dense<0xFF800000> : vector<8xf32>
    %25 = vector.multi_reduction <maximumf>, %24, %cst_19 [1] : vector<8x8xf32> to vector<8xf32>
    %26 = vector.shape_cast %25 : vector<8xf32> to vector<8x1xf32>
    %27 = vector.broadcast %26 : vector<8x1xf32> to vector<8x8xf32>
    %28 = arith.subf %24, %27 : vector<8x8xf32>
    %29 = math.exp %28 : vector<8x8xf32>
    %cst_20 = arith.constant dense<0.000000e+00> : vector<8xf32>
    %30 = vector.multi_reduction <add>, %29, %cst_20 [1] : vector<8x8xf32> to vector<8xf32>
    %31 = vector.shape_cast %30 : vector<8xf32> to vector<8x1xf32>
    %32 = arith.truncf %29 : vector<8x8xf32> to vector<8x8xbf16>
    %cst_21 = arith.constant dense<0.000000e+00> : vector<8x8xf32>
    %33 = tpu.matmul %32, %23, %cst_21 {dimension_numbers = #tpu.dot_dimension_numbers<[1], [0], [0], [1], [0, 0, 1, 1], [], []>} : vector<8x8xbf16>, vector<8x8xbf16>, vector<8x8xf32> -> vector<8x8xf32>
    %34 = tpu.reciprocal %31 {approx = true} : vector<8x1xf32> -> vector<8x1xf32>
    %35 = vector.broadcast %34 : vector<8x1xf32> to vector<8x8xf32>
    %36 = arith.mulf %33, %35 : vector<8x8xf32>
    %37 = arith.truncf %36 : vector<8x8xf32> to vector<8x8xbf16>
    %c0_22 = arith.constant 0 : index
    %c0_23 = arith.constant 0 : index
    %c0_24 = arith.constant 0 : index
    %38 = vector.load %arg11[%c0_22, %c0_23, %c0_24] : memref<4x8x32xbf16, #tpu.memory_space<vmem>>, vector<1x8x32xbf16>
    %39 = vector.shape_cast %38 : vector<1x8x32xbf16> to vector<8x32xbf16>
    %cst_25 = arith.constant dense<0.000000e+00> : vector<8x32xf32>
    %40 = tpu.matmul %37, %39, %cst_25 {dimension_numbers = #tpu.dot_dimension_numbers<[1], [0], [0], [1], [0, 0, 1, 1], [], []>} : vector<8x8xbf16>, vector<8x32xbf16>, vector<8x32xf32> -> vector<8x32xf32>
    %41 = arith.addf %8, %40 : vector<8x32xf32>
    %c1 = arith.constant 1 : index
    %c0_26 = arith.constant 0 : index
    %c0_27 = arith.constant 0 : index
    %42 = vector.load %arg5[%c1, %c0_26, %c0_27] : memref<4x32x8xbf16, #tpu.memory_space<vmem>>, vector<1x32x8xbf16>
    %43 = vector.shape_cast %42 : vector<1x32x8xbf16> to vector<32x8xbf16>
    %cst_28 = arith.constant dense<0.000000e+00> : vector<8x8xf32>
    %44 = tpu.matmul %4, %43, %cst_28 {dimension_numbers = #tpu.dot_dimension_numbers<[1], [0], [0], [1], [0, 0, 1, 1], [], []>} : vector<8x32xbf16>, vector<32x8xbf16>, vector<8x8xf32> -> vector<8x8xf32>
    %c1_29 = arith.constant 1 : index
    %c0_30 = arith.constant 0 : index
    %c0_31 = arith.constant 0 : index
    %45 = vector.load %arg8[%c1_29, %c0_30, %c0_31] : memref<4x1x8xbf16, #tpu.memory_space<vmem>>, vector<1x1x8xbf16>
    %46 = vector.shape_cast %45 : vector<1x1x8xbf16> to vector<1x8xbf16>
    %47 = arith.extf %46 : vector<1x8xbf16> to vector<1x8xf32>
    %48 = vector.broadcast %47 : vector<1x8xf32> to vector<8x8xf32>
    %49 = arith.addf %44, %48 : vector<8x8xf32>
    %cst_32 = arith.constant 0.353553385 : f32
    %50 = vector.broadcast %cst_32 : f32 to vector<8x8xf32>
    %51 = arith.mulf %49, %50 : vector<8x8xf32>
    %52 = arith.truncf %51 : vector<8x8xf32> to vector<8x8xbf16>
    %c1_33 = arith.constant 1 : index
    %c0_34 = arith.constant 0 : index
    %c0_35 = arith.constant 0 : index
    %53 = vector.load %arg14[%c1_33, %c0_34, %c0_35] : memref<4x8x8xbf16, #tpu.memory_space<vmem>>, vector<1x8x8xbf16>
    %54 = vector.shape_cast %53 : vector<1x8x8xbf16> to vector<8x8xbf16>
    %c1_36 = arith.constant 1 : index
    %c0_37 = arith.constant 0 : index
    %c0_38 = arith.constant 0 : index
    %55 = vector.load %arg15[%c1_36, %c0_37, %c0_38] : memref<4x8x8xbf16, #tpu.memory_space<vmem>>, vector<1x8x8xbf16>
    %56 = vector.shape_cast %55 : vector<1x8x8xbf16> to vector<8x8xbf16>
    %cst_39 = arith.constant dense<0.000000e+00> : vector<8x8xf32>
    %57 = tpu.matmul %52, %54, %cst_39 {dimension_numbers = #tpu.dot_dimension_numbers<[1], [1], [0], [0], [0, 0, 1, 0], [], []>} : vector<8x8xbf16>, vector<8x8xbf16>, vector<8x8xf32> -> vector<8x8xf32>
    %cst_40 = arith.constant dense<0xFF800000> : vector<8xf32>
    %58 = vector.multi_reduction <maximumf>, %57, %cst_40 [1] : vector<8x8xf32> to vector<8xf32>
    %59 = vector.shape_cast %58 : vector<8xf32> to vector<8x1xf32>
    %60 = vector.broadcast %59 : vector<8x1xf32> to vector<8x8xf32>
    %61 = arith.subf %57, %60 : vector<8x8xf32>
    %62 = math.exp %61 : vector<8x8xf32>
    %cst_41 = arith.constant dense<0.000000e+00> : vector<8xf32>
    %63 = vector.multi_reduction <add>, %62, %cst_41 [1] : vector<8x8xf32> to vector<8xf32>
    %64 = vector.shape_cast %63 : vector<8xf32> to vector<8x1xf32>
    %65 = arith.truncf %62 : vector<8x8xf32> to vector<8x8xbf16>
    %cst_42 = arith.constant dense<0.000000e+00> : vector<8x8xf32>
    %66 = tpu.matmul %65, %56, %cst_42 {dimension_numbers = #tpu.dot_dimension_numbers<[1], [0], [0], [1], [0, 0, 1, 1], [], []>} : vector<8x8xbf16>, vector<8x8xbf16>, vector<8x8xf32> -> vector<8x8xf32>
    %67 = tpu.reciprocal %64 {approx = true} : vector<8x1xf32> -> vector<8x1xf32>
    %68 = vector.broadcast %67 : vector<8x1xf32> to vector<8x8xf32>
    %69 = arith.mulf %66, %68 : vector<8x8xf32>
    %70 = arith.truncf %69 : vector<8x8xf32> to vector<8x8xbf16>
    %c1_43 = arith.constant 1 : index
    %c0_44 = arith.constant 0 : index
    %c0_45 = arith.constant 0 : index
    %71 = vector.load %arg11[%c1_43, %c0_44, %c0_45] : memref<4x8x32xbf16, #tpu.memory_space<vmem>>, vector<1x8x32xbf16>
    %72 = vector.shape_cast %71 : vector<1x8x32xbf16> to vector<8x32xbf16>
    %cst_46 = arith.constant dense<0.000000e+00> : vector<8x32xf32>
    %73 = tpu.matmul %70, %72, %cst_46 {dimension_numbers = #tpu.dot_dimension_numbers<[1], [0], [0], [1], [0, 0, 1, 1], [], []>} : vector<8x8xbf16>, vector<8x32xbf16>, vector<8x32xf32> -> vector<8x32xf32>
    %74 = arith.addf %41, %73 : vector<8x32xf32>
    %c2 = arith.constant 2 : index
    %c0_47 = arith.constant 0 : index
    %c0_48 = arith.constant 0 : index
    %75 = vector.load %arg5[%c2, %c0_47, %c0_48] : memref<4x32x8xbf16, #tpu.memory_space<vmem>>, vector<1x32x8xbf16>
    %76 = vector.shape_cast %75 : vector<1x32x8xbf16> to vector<32x8xbf16>
    %cst_49 = arith.constant dense<0.000000e+00> : vector<8x8xf32>
    %77 = tpu.matmul %4, %76, %cst_49 {dimension_numbers = #tpu.dot_dimension_numbers<[1], [0], [0], [1], [0, 0, 1, 1], [], []>} : vector<8x32xbf16>, vector<32x8xbf16>, vector<8x8xf32> -> vector<8x8xf32>
    %c2_50 = arith.constant 2 : index
    %c0_51 = arith.constant 0 : index
    %c0_52 = arith.constant 0 : index
    %78 = vector.load %arg8[%c2_50, %c0_51, %c0_52] : memref<4x1x8xbf16, #tpu.memory_space<vmem>>, vector<1x1x8xbf16>
    %79 = vector.shape_cast %78 : vector<1x1x8xbf16> to vector<1x8xbf16>
    %80 = arith.extf %79 : vector<1x8xbf16> to vector<1x8xf32>
    %81 = vector.broadcast %80 : vector<1x8xf32> to vector<8x8xf32>
    %82 = arith.addf %77, %81 : vector<8x8xf32>
    %cst_53 = arith.constant 0.353553385 : f32
    %83 = vector.broadcast %cst_53 : f32 to vector<8x8xf32>
    %84 = arith.mulf %82, %83 : vector<8x8xf32>
    %85 = arith.truncf %84 : vector<8x8xf32> to vector<8x8xbf16>
    %c2_54 = arith.constant 2 : index
    %c0_55 = arith.constant 0 : index
    %c0_56 = arith.constant 0 : index
    %86 = vector.load %arg14[%c2_54, %c0_55, %c0_56] : memref<4x8x8xbf16, #tpu.memory_space<vmem>>, vector<1x8x8xbf16>
    %87 = vector.shape_cast %86 : vector<1x8x8xbf16> to vector<8x8xbf16>
    %c2_57 = arith.constant 2 : index
    %c0_58 = arith.constant 0 : index
    %c0_59 = arith.constant 0 : index
    %88 = vector.load %arg15[%c2_57, %c0_58, %c0_59] : memref<4x8x8xbf16, #tpu.memory_space<vmem>>, vector<1x8x8xbf16>
    %89 = vector.shape_cast %88 : vector<1x8x8xbf16> to vector<8x8xbf16>
    %cst_60 = arith.constant dense<0.000000e+00> : vector<8x8xf32>
    %90 = tpu.matmul %85, %87, %cst_60 {dimension_numbers = #tpu.dot_dimension_numbers<[1], [1], [0], [0], [0, 0, 1, 0], [], []>} : vector<8x8xbf16>, vector<8x8xbf16>, vector<8x8xf32> -> vector<8x8xf32>
    %cst_61 = arith.constant dense<0xFF800000> : vector<8xf32>
    %91 = vector.multi_reduction <maximumf>, %90, %cst_61 [1] : vector<8x8xf32> to vector<8xf32>
    %92 = vector.shape_cast %91 : vector<8xf32> to vector<8x1xf32>
    %93 = vector.broadcast %92 : vector<8x1xf32> to vector<8x8xf32>
    %94 = arith.subf %90, %93 : vector<8x8xf32>
    %95 = math.exp %94 : vector<8x8xf32>
    %cst_62 = arith.constant dense<0.000000e+00> : vector<8xf32>
    %96 = vector.multi_reduction <add>, %95, %cst_62 [1] : vector<8x8xf32> to vector<8xf32>
    %97 = vector.shape_cast %96 : vector<8xf32> to vector<8x1xf32>
    %98 = arith.truncf %95 : vector<8x8xf32> to vector<8x8xbf16>
    %cst_63 = arith.constant dense<0.000000e+00> : vector<8x8xf32>
    %99 = tpu.matmul %98, %89, %cst_63 {dimension_numbers = #tpu.dot_dimension_numbers<[1], [0], [0], [1], [0, 0, 1, 1], [], []>} : vector<8x8xbf16>, vector<8x8xbf16>, vector<8x8xf32> -> vector<8x8xf32>
    %100 = tpu.reciprocal %97 {approx = true} : vector<8x1xf32> -> vector<8x1xf32>
    %101 = vector.broadcast %100 : vector<8x1xf32> to vector<8x8xf32>
    %102 = arith.mulf %99, %101 : vector<8x8xf32>
    %103 = arith.truncf %102 : vector<8x8xf32> to vector<8x8xbf16>
    %c2_64 = arith.constant 2 : index
    %c0_65 = arith.constant 0 : index
    %c0_66 = arith.constant 0 : index
    %104 = vector.load %arg11[%c2_64, %c0_65, %c0_66] : memref<4x8x32xbf16, #tpu.memory_space<vmem>>, vector<1x8x32xbf16>
    %105 = vector.shape_cast %104 : vector<1x8x32xbf16> to vector<8x32xbf16>
    %cst_67 = arith.constant dense<0.000000e+00> : vector<8x32xf32>
    %106 = tpu.matmul %103, %105, %cst_67 {dimension_numbers = #tpu.dot_dimension_numbers<[1], [0], [0], [1], [0, 0, 1, 1], [], []>} : vector<8x8xbf16>, vector<8x32xbf16>, vector<8x32xf32> -> vector<8x32xf32>
    %107 = arith.addf %74, %106 : vector<8x32xf32>
    %c3 = arith.constant 3 : index
    %c0_68 = arith.constant 0 : index
    %c0_69 = arith.constant 0 : index
    %108 = vector.load %arg5[%c3, %c0_68, %c0_69] : memref<4x32x8xbf16, #tpu.memory_space<vmem>>, vector<1x32x8xbf16>
    %109 = vector.shape_cast %108 : vector<1x32x8xbf16> to vector<32x8xbf16>
    %cst_70 = arith.constant dense<0.000000e+00> : vector<8x8xf32>
    %110 = tpu.matmul %4, %109, %cst_70 {dimension_numbers = #tpu.dot_dimension_numbers<[1], [0], [0], [1], [0, 0, 1, 1], [], []>} : vector<8x32xbf16>, vector<32x8xbf16>, vector<8x8xf32> -> vector<8x8xf32>
    %c3_71 = arith.constant 3 : index
    %c0_72 = arith.constant 0 : index
    %c0_73 = arith.constant 0 : index
    %111 = vector.load %arg8[%c3_71, %c0_72, %c0_73] : memref<4x1x8xbf16, #tpu.memory_space<vmem>>, vector<1x1x8xbf16>
    %112 = vector.shape_cast %111 : vector<1x1x8xbf16> to vector<1x8xbf16>
    %113 = arith.extf %112 : vector<1x8xbf16> to vector<1x8xf32>
    %114 = vector.broadcast %113 : vector<1x8xf32> to vector<8x8xf32>
    %115 = arith.addf %110, %114 : vector<8x8xf32>
    %cst_74 = arith.constant 0.353553385 : f32
    %116 = vector.broadcast %cst_74 : f32 to vector<8x8xf32>
    %117 = arith.mulf %115, %116 : vector<8x8xf32>
    %118 = arith.truncf %117 : vector<8x8xf32> to vector<8x8xbf16>
    %c3_75 = arith.constant 3 : index
    %c0_76 = arith.constant 0 : index
    %c0_77 = arith.constant 0 : index
    %119 = vector.load %arg14[%c3_75, %c0_76, %c0_77] : memref<4x8x8xbf16, #tpu.memory_space<vmem>>, vector<1x8x8xbf16>
    %120 = vector.shape_cast %119 : vector<1x8x8xbf16> to vector<8x8xbf16>
    %c3_78 = arith.constant 3 : index
    %c0_79 = arith.constant 0 : index
    %c0_80 = arith.constant 0 : index
    %121 = vector.load %arg15[%c3_78, %c0_79, %c0_80] : memref<4x8x8xbf16, #tpu.memory_space<vmem>>, vector<1x8x8xbf16>
    %122 = vector.shape_cast %121 : vector<1x8x8xbf16> to vector<8x8xbf16>
    %cst_81 = arith.constant dense<0.000000e+00> : vector<8x8xf32>
    %123 = tpu.matmul %118, %120, %cst_81 {dimension_numbers = #tpu.dot_dimension_numbers<[1], [1], [0], [0], [0, 0, 1, 0], [], []>} : vector<8x8xbf16>, vector<8x8xbf16>, vector<8x8xf32> -> vector<8x8xf32>
    %cst_82 = arith.constant dense<0xFF800000> : vector<8xf32>
    %124 = vector.multi_reduction <maximumf>, %123, %cst_82 [1] : vector<8x8xf32> to vector<8xf32>
    %125 = vector.shape_cast %124 : vector<8xf32> to vector<8x1xf32>
    %126 = vector.broadcast %125 : vector<8x1xf32> to vector<8x8xf32>
    %127 = arith.subf %123, %126 : vector<8x8xf32>
    %128 = math.exp %127 : vector<8x8xf32>
    %cst_83 = arith.constant dense<0.000000e+00> : vector<8xf32>
    %129 = vector.multi_reduction <add>, %128, %cst_83 [1] : vector<8x8xf32> to vector<8xf32>
    %130 = vector.shape_cast %129 : vector<8xf32> to vector<8x1xf32>
    %131 = arith.truncf %128 : vector<8x8xf32> to vector<8x8xbf16>
    %cst_84 = arith.constant dense<0.000000e+00> : vector<8x8xf32>
    %132 = tpu.matmul %131, %122, %cst_84 {dimension_numbers = #tpu.dot_dimension_numbers<[1], [0], [0], [1], [0, 0, 1, 1], [], []>} : vector<8x8xbf16>, vector<8x8xbf16>, vector<8x8xf32> -> vector<8x8xf32>
    %133 = tpu.reciprocal %130 {approx = true} : vector<8x1xf32> -> vector<8x1xf32>
    %134 = vector.broadcast %133 : vector<8x1xf32> to vector<8x8xf32>
    %135 = arith.mulf %132, %134 : vector<8x8xf32>
    %136 = arith.truncf %135 : vector<8x8xf32> to vector<8x8xbf16>
    %c3_85 = arith.constant 3 : index
    %c0_86 = arith.constant 0 : index
    %c0_87 = arith.constant 0 : index
    %137 = vector.load %arg11[%c3_85, %c0_86, %c0_87] : memref<4x8x32xbf16, #tpu.memory_space<vmem>>, vector<1x8x32xbf16>
    %138 = vector.shape_cast %137 : vector<1x8x32xbf16> to vector<8x32xbf16>
    %cst_88 = arith.constant dense<0.000000e+00> : vector<8x32xf32>
    %139 = tpu.matmul %136, %138, %cst_88 {dimension_numbers = #tpu.dot_dimension_numbers<[1], [0], [0], [1], [0, 0, 1, 1], [], []>} : vector<8x8xbf16>, vector<8x32xbf16>, vector<8x32xf32> -> vector<8x32xf32>
    %140 = arith.addf %107, %139 : vector<8x32xf32>
    %141 = arith.truncf %140 : vector<8x32xf32> to vector<8x32xbf16>
    %c0_89 = arith.constant 0 : index
    %c0_90 = arith.constant 0 : index
    %c0_91 = arith.constant 0 : index
    %142 = vector.load %arg13[%c0_89, %c0_90, %c0_91] : memref<1x8x32xbf16, #tpu.memory_space<vmem>>, vector<1x8x32xbf16>
    %143 = vector.shape_cast %142 : vector<1x8x32xbf16> to vector<8x32xbf16>
    %144 = vector.shape_cast %141 : vector<8x32xbf16> to vector<1x8x32xbf16>
    tpu.vector_store %arg13[%c0_89, %c0_90, %c0_91], %144 {strides = array<i32>} : memref<1x8x32xbf16, #tpu.memory_space<vmem>>, vector<1x8x32xbf16>,
    return
  }
  func.func @transform_0(%arg0: i32, %arg1: i32) -> (i32, i32, i32) {
    %c0_i32 = arith.constant 0 : i32
    %c0_i32_0 = arith.constant 0 : i32
    return %arg0, %arg1, %c0_i32 : i32, i32, i32
  }
  func.func @transform_1(%arg0: i32, %arg1: i32) -> (i32, i32, i32) {
    %c0_i32 = arith.constant 0 : i32
    %c0_i32_0 = arith.constant 0 : i32
    %c0_i32_1 = arith.constant 0 : i32
    return %arg0, %c0_i32, %c0_i32_0 : i32, i32, i32
  }
  func.func @transform_2(%arg0: i32, %arg1: i32) -> (i32, i32, i32) {
    %c0_i32 = arith.constant 0 : i32
    %c0_i32_0 = arith.constant 0 : i32
    %c0_i32_1 = arith.constant 0 : i32
    return %arg0, %c0_i32, %c0_i32_0 : i32, i32, i32
  }
  func.func @transform_3(%arg0: i32, %arg1: i32) -> (i32, i32, i32) {
    %c0_i32 = arith.constant 0 : i32
    %c0_i32_0 = arith.constant 0 : i32
    %c0_i32_1 = arith.constant 0 : i32
    %c0_i32_2 = arith.constant 0 : i32
    return %c0_i32, %c0_i32_0, %c0_i32_1 : i32, i32, i32
  }
  func.func @transform_4(%arg0: i32, %arg1: i32) -> (i32, i32, i32) {
    %c0_i32 = arith.constant 0 : i32
    %c0_i32_0 = arith.constant 0 : i32
    %c0_i32_1 = arith.constant 0 : i32
    %c0_i32_2 = arith.constant 0 : i32
    return %c0_i32, %c0_i32_0, %c0_i32_1 : i32, i32, i32
  }
  func.func @transform_5(%arg0: i32, %arg1: i32) -> (i32, i32, i32) {
    %c0_i32 = arith.constant 0 : i32
    %c0_i32_0 = arith.constant 0 : i32
    %c0_i32_1 = arith.constant 0 : i32
    %c0_i32_2 = arith.constant 0 : i32
    return %c0_i32, %c0_i32_0, %c0_i32_1 : i32, i32, i32
  }
  func.func @transform_6(%arg0: i32, %arg1: i32) -> (i32, i32, i32) {
    %c0_i32 = arith.constant 0 : i32
    %c0_i32_0 = arith.constant 0 : i32
    %c0_i32_1 = arith.constant 0 : i32
    %c0_i32_2 = arith.constant 0 : i32
    return %c0_i32, %c0_i32_0, %c0_i32_1 : i32, i32, i32
  }
  func.func @transform_7(%arg0: i32, %arg1: i32) -> (i32, i32, i32) {
    %c0_i32 = arith.constant 0 : i32
    %c0_i32_0 = arith.constant 0 : i32
    %c0_i32_1 = arith.constant 0 : i32
    %c0_i32_2 = arith.constant 0 : i32
    return %c0_i32, %c0_i32_0, %c0_i32_1 : i32, i32, i32
  }
  func.func @transform_8(%arg0: i32, %arg1: i32) -> (i32, i32, i32) {
    %c0_i32 = arith.constant 0 : i32
    %c0_i32_0 = arith.constant 0 : i32
    %c0_i32_1 = arith.constant 0 : i32
    %c0_i32_2 = arith.constant 0 : i32
    return %c0_i32, %c0_i32_0, %c0_i32_1 : i32, i32, i32
  }
  func.func @transform_9(%arg0: i32, %arg1: i32) -> (i32, i32, i32) {
    %c0_i32 = arith.constant 0 : i32
    %c0_i32_0 = arith.constant 0 : i32
    %c0_i32_1 = arith.constant 0 : i32
    %c0_i32_2 = arith.constant 0 : i32
    return %c0_i32, %c0_i32_0, %c0_i32_1 : i32, i32, i32
  }
  func.func @transform_10(%arg0: i32, %arg1: i32) -> (i32, i32) {
    %c0_i32 = arith.constant 0 : i32
    %c0_i32_0 = arith.constant 0 : i32
    %c0_i32_1 = arith.constant 0 : i32
    return %c0_i32, %c0_i32_0 : i32, i32
  }
  func.func @transform_11(%arg0: i32, %arg1: i32) -> (i32, i32, i32) {
    %c0_i32 = arith.constant 0 : i32
    %c0_i32_0 = arith.constant 0 : i32
    return %arg0, %arg1, %c0_i32 : i32, i32, i32
  }
}

</mosaic_0001>

<llo_original>
// kernel: tpu_custom_call.1
$region0: #{tpu_custom_call.1}
  #allocation0 [shape = 'u32[]', space=smem, size = 0x4, offset = 0x4, fixed_abs, tag = 'smem constant byte address 0x4 - core index']
  #allocation1 [shape = 'u32[72,128]{1,0:T(1,128)}', space=vmem, size = 0x9000, scoped, tag = 'internal scratch']
  #allocation2 [shape = 'bf16[4,8,8]{2,1,0:T(8,128)(2,1)}', space=vmem, size = 0x2000, scoped, tag = 'scratch operand']
  #allocation3 [shape = 'bf16[4,8,8]{2,1,0:T(8,128)(2,1)}', space=vmem, size = 0x2000, scoped, tag = 'scratch operand']
  %s0 = inlined_call_operand.vmem [shape: bf16[2,8,32], index: 0, kind: input, shape index: {}]
  %s1 = inlined_call_operand.vmem [shape: bf16[2,8,32], index: 1, kind: input, shape index: {}]
  %s2 = inlined_call_operand.vmem [shape: bf16[2,8,32], index: 2, kind: input, shape index: {}]
  %s3 = inlined_call_operand.vmem [shape: bf16[4,32,8], index: 3, kind: input, shape index: {}]
  %s4 = inlined_call_operand.vmem [shape: bf16[4,32,8], index: 4, kind: input, shape index: {}]
  %s5 = inlined_call_operand.vmem [shape: bf16[4,32,8], index: 5, kind: input, shape index: {}]
  %s6 = inlined_call_operand.vmem [shape: bf16[4,1,8], index: 6, kind: input, shape index: {}]
  %s7 = inlined_call_operand.vmem [shape: bf16[4,1,8], index: 7, kind: input, shape index: {}]
  %s8 = inlined_call_operand.vmem [shape: bf16[4,1,8], index: 8, kind: input, shape index: {}]
  %s9 = inlined_call_operand.vmem [shape: bf16[4,8,32], index: 9, kind: input, shape index: {}]
  %s10 = inlined_call_operand.vmem [shape: bf16[1,32], index: 10, kind: input, shape index: {}]
  %s11 = inlined_call_operand.hbm [shape: bf16[2,8,32], index: 11, kind: output, shape index: {}]
  %s12 = sld [smem:[#allocation0]]
  $region81: #{tpu_custom_call.1} parent=0
    _
  %s14 = ssub.s32 1, %s12
  %s15 = scalar_select 0, %s14, %s12
  $region1: #{tpu_custom_call.1} parent=0
    #allocation4 [shape = 'u8[4096]{0}', space=vmem, size = 0x1000, scoped, tag = 'output window, operand 0']
    #allocation5 [shape = 's32[2]{0}', space=sflag, size = 0x8, scoped, tag = 'scoped memory for tpu_custom_call.1']
    %16 = vsyncpa [#allocation5], 0
    %s17 = scalar_lea.sflag [#allocation5], 1
    %18 = vsyncpa %s17, 0
    loop: start=0, step=1, limit=4
    $region2: #{tpu_custom_call.1} parent=1 // loop_pre_header
      _
    $region3: #{tpu_custom_call.1} parent=1 // loop_header
      %s20 = sphi 0, %s24
      %p21 = scmp.ge.s32.totalorder %s20, 4
      %s27 = sphi 0, %s39
      %s28 = sphi 0, %s35
      %s29 = sphi 0, %s27
      %s30 = sphi 0, %s28
      %s31 = sphi 0, %s29
      %s32 = sphi 0, %s30
      %s44 = sphi 0, %s46
      %s47 = sphi 0, %s44
      %s48 = sphi 0, %s47
      %s64 = sphi 0, %s48
      %s70 = sphi 0, %s72
      %s73 = sphi 0, %s70
      %s74 = sphi 0, %s73
      %s90 = sphi 0, %s74
      %s96 = sphi 0, %s98
      %s99 = sphi 0, %s96
      %s100 = sphi 0, %s99
      %s116 = sphi 0, %s100
      %s120 = sphi 0, %s120
      %s122 = sphi 0, %s120
      %s123 = sphi 0, %s122
      %s137 = sphi 0, %s123
      %s141 = sphi 0, %s141
      %s143 = sphi 0, %s141
      %s144 = sphi 0, %s143
      %s158 = sphi 0, %s144
      %s162 = sphi 0, %s162
      %s164 = sphi 0, %s162
      %s165 = sphi 0, %s164
      %s179 = sphi 0, %s165
      %s183 = sphi 0, %s183
      %s185 = sphi 0, %s183
      %s186 = sphi 0, %s185
      %s200 = sphi 0, %s186
      %s204 = sphi 0, %s204
      %s206 = sphi 0, %s204
      %s207 = sphi 0, %s206
      %s221 = sphi 0, %s207
      %s225 = sphi 0, %s225
      %s227 = sphi 0, %s225
      %s228 = sphi 0, %s227
      %s242 = sphi 0, %s228
      %s246 = sphi 0, %s246
      %s248 = sphi 0, %s246
      %s249 = sphi 0, %s248
      %s263 = sphi 0, %s249
      %s267 = sphi 0, %s267
      %s269 = sphi 0, %s267
      %s270 = sphi 0, %s269
      %s284 = sphi 0, %s270
      %s292 = sphi 0, %s294
      %s295 = sphi 0, %s292
      %s296 = sphi 0, %s295
      %s312 = sphi 0, %s296
    $region4: #{tpu_custom_call.1} parent=1 // loop_header_branch
      %23 = sbr.rel (%p21) target = $region8
    $region5: #{tpu_custom_call.1} parent=1 // loop_body
      %s25 = ssub.s32 %s20, 1
      %s26 = ssub.s32 %s20, 2
      %s33 = sadd.s32 1, %s28
      %p34 = scmp.ge.s32.totalorder %s33, 1
      %s35 = scalar_select %p34, 0, %s33
      %s36 = sadd.s32 1, %s27
      %s37 = scalar_select %p34, %s36, %s27
      %p38 = scmp.ge.s32.totalorder %s37, 2
      %s39 = scalar_select %p38, 0, %s37
      %s40 = ssub.s32 %s27, %s39
      %s41 = ssub.s32 %s28, %s35
      %s42 = sor.u32 %s40, %s41
      %p43 = scmp.eq.s32.totalorder %s42, 0
      %s45 = sadd.s32 %s44, 1
      %s46 = scalar_select %p43, %s44, %s45
      %p49 = pneg %p43
      %p50 = scmp.eq.s32.totalorder %s20, 1
      %p51 = por %p49, %p50
      %p52 = scmp.ne.s32.totalorder %s44, %s47
      %p53 = scmp.eq.s32.totalorder %s20, 0
      %p54 = por %p52, %p53
      %p55 = scmp.ne.s32.totalorder %s44, %s47
      %p56 = scmp.eq.s32.totalorder %s25, 1
      %p57 = por %p55, %p56
      %p58 = scmp.ne.s32.totalorder %s47, %s48
      %p59 = scmp.eq.s32.totalorder %s25, 0
      %p60 = por %p58, %p59
      %p61 = scmp.ne.s32.totalorder %s47, %s48
      %p62 = scmp.eq.s32.totalorder %s26, 1
      %p63 = por %p61, %p62
      %p65 = scmp.ne.s32.totalorder %s48, %s64
      %p66 = scmp.eq.s32.totalorder %s26, 0
      %p67 = por %p65, %p66
      %s68 = ssub.s32 %s27, %s39
      %p69 = scmp.eq.s32.totalorder %s68, 0
      %s71 = sadd.s32 %s70, 1
      %s72 = scalar_select %p69, %s70, %s71
      %p75 = pneg %p69
      %p76 = scmp.eq.s32.totalorder %s20, 1
      %p77 = por %p75, %p76
      %p78 = scmp.ne.s32.totalorder %s70, %s73
      %p79 = scmp.eq.s32.totalorder %s20, 0
      %p80 = por %p78, %p79
      %p81 = scmp.ne.s32.totalorder %s70, %s73
      %p82 = scmp.eq.s32.totalorder %s25, 1
      %p83 = por %p81, %p82
      %p84 = scmp.ne.s32.totalorder %s73, %s74
      %p85 = scmp.eq.s32.totalorder %s25, 0
      %p86 = por %p84, %p85
      %p87 = scmp.ne.s32.totalorder %s73, %s74
      %p88 = scmp.eq.s32.totalorder %s26, 1
      %p89 = por %p87, %p88
      %p91 = scmp.ne.s32.totalorder %s74, %s90
      %p92 = scmp.eq.s32.totalorder %s26, 0
      %p93 = por %p91, %p92
      %s94 = ssub.s32 %s27, %s39
      %p95 = scmp.eq.s32.totalorder %s94, 0
      %s97 = sadd.s32 %s96, 1
      %s98 = scalar_select %p95, %s96, %s97
      %p101 = pneg %p95
      %p102 = scmp.eq.s32.totalorder %s20, 1
      %p103 = por %p101, %p102
      %p104 = scmp.ne.s32.totalorder %s96, %s99
      %p105 = scmp.eq.s32.totalorder %s20, 0
      %p106 = por %p104, %p105
      %p107 = scmp.ne.s32.totalorder %s96, %s99
      %p108 = scmp.eq.s32.totalorder %s25, 1
      %p109 = por %p107, %p108
      %p110 = scmp.ne.s32.totalorder %s99, %s100
      %p111 = scmp.eq.s32.totalorder %s25, 0
      %p112 = por %p110, %p111
      %p113 = scmp.ne.s32.totalorder %s99, %s100
      %p114 = scmp.eq.s32.totalorder %s26, 1
      %p115 = por %p113, %p114
      %p117 = scmp.ne.s32.totalorder %s100, %s116
      %p118 = scmp.eq.s32.totalorder %s26, 0
      %p119 = por %p117, %p118
      %s121 = sadd.s32 %s120, 1
      %p124 = scmp.eq.s32.totalorder %s20, 1
      %p125 = scmp.ne.s32.totalorder %s120, %s122
      %p126 = scmp.eq.s32.totalorder %s20, 0
      %p127 = por %p125, %p126
      %p128 = scmp.ne.s32.totalorder %s120, %s122
      %p129 = scmp.eq.s32.totalorder %s25, 1
      %p130 = por %p128, %p129
      %p131 = scmp.ne.s32.totalorder %s122, %s123
      %p132 = scmp.eq.s32.totalorder %s25, 0
      %p133 = por %p131, %p132
      %p134 = scmp.ne.s32.totalorder %s122, %s123
      %p135 = scmp.eq.s32.totalorder %s26, 1
      %p136 = por %p134, %p135
      %p138 = scmp.ne.s32.totalorder %s123, %s137
      %p139 = scmp.eq.s32.totalorder %s26, 0
      %p140 = por %p138, %p139
      %s142 = sadd.s32 %s141, 1
      %p145 = scmp.eq.s32.totalorder %s20, 1
      %p146 = scmp.ne.s32.totalorder %s141, %s143
      %p147 = scmp.eq.s32.totalorder %s20, 0
      %p148 = por %p146, %p147
      %p149 = scmp.ne.s32.totalorder %s141, %s143
      %p150 = scmp.eq.s32.totalorder %s25, 1
      %p151 = por %p149, %p150
      %p152 = scmp.ne.s32.totalorder %s143, %s144
      %p153 = scmp.eq.s32.totalorder %s25, 0
      %p154 = por %p152, %p153
      %p155 = scmp.ne.s32.totalorder %s143, %s144
      %p156 = scmp.eq.s32.totalorder %s26, 1
      %p157 = por %p155, %p156
      %p159 = scmp.ne.s32.totalorder %s144, %s158
      %p160 = scmp.eq.s32.totalorder %s26, 0
      %p161 = por %p159, %p160
      %s163 = sadd.s32 %s162, 1
      %p166 = scmp.eq.s32.totalorder %s20, 1
      %p167 = scmp.ne.s32.totalorder %s162, %s164
      %p168 = scmp.eq.s32.totalorder %s20, 0
      %p169 = por %p167, %p168
      %p170 = scmp.ne.s32.totalorder %s162, %s164
      %p171 = scmp.eq.s32.totalorder %s25, 1
      %p172 = por %p170, %p171
      %p173 = scmp.ne.s32.totalorder %s164, %s165
      %p174 = scmp.eq.s32.totalorder %s25, 0
      %p175 = por %p173, %p174
      %p176 = scmp.ne.s32.totalorder %s164, %s165
      %p177 = scmp.eq.s32.totalorder %s26, 1
      %p178 = por %p176, %p177
      %p180 = scmp.ne.s32.totalorder %s165, %s179
      %p181 = scmp.eq.s32.totalorder %s26, 0
      %p182 = por %p180, %p181
      %s184 = sadd.s32 %s183, 1
      %p187 = scmp.eq.s32.totalorder %s20, 1
      %p188 = scmp.ne.s32.totalorder %s183, %s185
      %p189 = scmp.eq.s32.totalorder %s20, 0
      %p190 = por %p188, %p189
      %p191 = scmp.ne.s32.totalorder %s183, %s185
      %p192 = scmp.eq.s32.totalorder %s25, 1
      %p193 = por %p191, %p192
      %p194 = scmp.ne.s32.totalorder %s185, %s186
      %p195 = scmp.eq.s32.totalorder %s25, 0
      %p196 = por %p194, %p195
      %p197 = scmp.ne.s32.totalorder %s185, %s186
      %p198 = scmp.eq.s32.totalorder %s26, 1
      %p199 = por %p197, %p198
      %p201 = scmp.ne.s32.totalorder %s186, %s200
      %p202 = scmp.eq.s32.totalorder %s26, 0
      %p203 = por %p201, %p202
      %s205 = sadd.s32 %s204, 1
      %p208 = scmp.eq.s32.totalorder %s20, 1
      %p209 = scmp.ne.s32.totalorder %s204, %s206
      %p210 = scmp.eq.s32.totalorder %s20, 0
      %p211 = por %p209, %p210
      %p212 = scmp.ne.s32.totalorder %s204, %s206
      %p213 = scmp.eq.s32.totalorder %s25, 1
      %p214 = por %p212, %p213
      %p215 = scmp.ne.s32.totalorder %s206, %s207
      %p216 = scmp.eq.s32.totalorder %s25, 0
      %p217 = por %p215, %p216
      %p218 = scmp.ne.s32.totalorder %s206, %s207
      %p219 = scmp.eq.s32.totalorder %s26, 1
      %p220 = por %p218, %p219
      %p222 = scmp.ne.s32.totalorder %s207, %s221
      %p223 = scmp.eq.s32.totalorder %s26, 0
      %p224 = por %p222, %p223
      %s226 = sadd.s32 %s225, 1
      %p229 = scmp.eq.s32.totalorder %s20, 1
      %p230 = scmp.ne.s32.totalorder %s225, %s227
      %p231 = scmp.eq.s32.totalorder %s20, 0
      %p232 = por %p230, %p231
      %p233 = scmp.ne.s32.totalorder %s225, %s227
      %p234 = scmp.eq.s32.totalorder %s25, 1
      %p235 = por %p233, %p234
      %p236 = scmp.ne.s32.totalorder %s227, %s228
      %p237 = scmp.eq.s32.totalorder %s25, 0
      %p238 = por %p236, %p237
      %p239 = scmp.ne.s32.totalorder %s227, %s228
      %p240 = scmp.eq.s32.totalorder %s26, 1
      %p241 = por %p239, %p240
      %p243 = scmp.ne.s32.totalorder %s228, %s242
      %p244 = scmp.eq.s32.totalorder %s26, 0
      %p245 = por %p243, %p244
      %s247 = sadd.s32 %s246, 1
      %p250 = scmp.eq.s32.totalorder %s20, 1
      %p251 = scmp.ne.s32.totalorder %s246, %s248
      %p252 = scmp.eq.s32.totalorder %s20, 0
      %p253 = por %p251, %p252
      %p254 = scmp.ne.s32.totalorder %s246, %s248
      %p255 = scmp.eq.s32.totalorder %s25, 1
      %p256 = por %p254, %p255
      %p257 = scmp.ne.s32.totalorder %s248, %s249
      %p258 = scmp.eq.s32.totalorder %s25, 0
      %p259 = por %p257, %p258
      %p260 = scmp.ne.s32.totalorder %s248, %s249
      %p261 = scmp.eq.s32.totalorder %s26, 1
      %p262 = por %p260, %p261
      %p264 = scmp.ne.s32.totalorder %s249, %s263
      %p265 = scmp.eq.s32.totalorder %s26, 0
      %p266 = por %p264, %p265
      %s268 = sadd.s32 %s267, 1
      %p271 = scmp.eq.s32.totalorder %s20, 1
      %p272 = scmp.ne.s32.totalorder %s267, %s269
      %p273 = scmp.eq.s32.totalorder %s20, 0
      %p274 = por %p272, %p273
      %p275 = scmp.ne.s32.totalorder %s267, %s269
      %p276 = scmp.eq.s32.totalorder %s25, 1
      %p277 = por %p275, %p276
      %p278 = scmp.ne.s32.totalorder %s269, %s270
      %p279 = scmp.eq.s32.totalorder %s25, 0
      %p280 = por %p278, %p279
      %p281 = scmp.ne.s32.totalorder %s269, %s270
      %p282 = scmp.eq.s32.totalorder %s26, 1
      %p283 = por %p281, %p282
      %p285 = scmp.ne.s32.totalorder %s270, %s284
      %p286 = scmp.eq.s32.totalorder %s26, 0
      %p287 = por %p285, %p286
      %s288 = ssub.s32 %s27, %s39
      %s289 = ssub.s32 %s28, %s35
      %s290 = sor.u32 %s288, %s289
      %p291 = scmp.eq.s32.totalorder %s290, 0
      %s293 = sadd.s32 %s292, 1
      %s294 = scalar_select %p291, %s292, %s293
      %p297 = pneg %p291
      %p298 = scmp.eq.s32.totalorder %s20, 1
      %p299 = por %p297, %p298
      %p300 = scmp.ne.s32.totalorder %s292, %s295
      %p301 = scmp.eq.s32.totalorder %s20, 0
      %p302 = por %p300, %p301
      %p303 = scmp.ne.s32.totalorder %s292, %s295
      %p304 = scmp.eq.s32.totalorder %s25, 1
      %p305 = por %p303, %p304
      %p306 = scmp.ne.s32.totalorder %s295, %s296
      %p307 = scmp.eq.s32.totalorder %s25, 0
      %p308 = por %p306, %p307
      %p309 = scmp.ne.s32.totalorder %s295, %s296
      %p310 = scmp.eq.s32.totalorder %s26, 1
      %p311 = por %p309, %p310
      %p313 = scmp.ne.s32.totalorder %s296, %s312
      %p314 = scmp.eq.s32.totalorder %s26, 0
      %p315 = por %p313, %p314
      %p316 = scmp.le.s32.totalorder 1, %s20
      %p317 = scmp.lt.s32.totalorder %s20, 3
      %p318 = pnand %p316, %p317
      %p319 = pneg %p318
      // Predicated region
      $region9: #{tpu_custom_call.1} parent=5 // pred_check
        _
      $region10: #{tpu_custom_call.1} parent=5 // pred_check_branch
        %321 = sbr.rel (%p318) target = $region12
      $region11: #{tpu_custom_call.1} parent=5 // pred_region
        %s322 = ssub.s32 %s20, 1
        // Predicated region
        $region13: #{tpu_custom_call.1} parent=11 // pred_check
          %p323 = pneg %p133
        $region14: #{tpu_custom_call.1} parent=11 // pred_check_branch
          %325 = sbr.rel (%p323) target = $region16
        $region15: #{tpu_custom_call.1} parent=11 // pred_region
          _
        $region16: #{tpu_custom_call.1} parent=11 // pred_fallthru
          _
        // Predicated region
        $region17: #{tpu_custom_call.1} parent=11 // pred_check
          %p326 = pneg %p154
        $region18: #{tpu_custom_call.1} parent=11 // pred_check_branch
          %328 = sbr.rel (%p326) target = $region20
        $region19: #{tpu_custom_call.1} parent=11 // pred_region
          _
        $region20: #{tpu_custom_call.1} parent=11 // pred_fallthru
          _
        // Predicated region
        $region21: #{tpu_custom_call.1} parent=11 // pred_check
          %p329 = pneg %p175
        $region22: #{tpu_custom_call.1} parent=11 // pred_check_branch
          %331 = sbr.rel (%p329) target = $region24
        $region23: #{tpu_custom_call.1} parent=11 // pred_region
          _
        $region24: #{tpu_custom_call.1} parent=11 // pred_fallthru
          _
        // Predicated region
        $region25: #{tpu_custom_call.1} parent=11 // pred_check
          %p332 = pneg %p196
        $region26: #{tpu_custom_call.1} parent=11 // pred_check_branch
          %334 = sbr.rel (%p332) target = $region28
        $region27: #{tpu_custom_call.1} parent=11 // pred_region
          _
        $region28: #{tpu_custom_call.1} parent=11 // pred_fallthru
          _
        // Predicated region
        $region29: #{tpu_custom_call.1} parent=11 // pred_check
          %p335 = pneg %p217
        $region30: #{tpu_custom_call.1} parent=11 // pred_check_branch
          %337 = sbr.rel (%p335) target = $region32
        $region31: #{tpu_custom_call.1} parent=11 // pred_region
          _
        $region32: #{tpu_custom_call.1} parent=11 // pred_fallthru
          _
        // Predicated region
        $region33: #{tpu_custom_call.1} parent=11 // pred_check
          %p338 = pneg %p238
        $region34: #{tpu_custom_call.1} parent=11 // pred_check_branch
          %340 = sbr.rel (%p338) target = $region36
        $region35: #{tpu_custom_call.1} parent=11 // pred_region
          _
        $region36: #{tpu_custom_call.1} parent=11 // pred_fallthru
          _
        // Predicated region
        $region37: #{tpu_custom_call.1} parent=11 // pred_check
          %p341 = pneg %p259
        $region38: #{tpu_custom_call.1} parent=11 // pred_check_branch
          %343 = sbr.rel (%p341) target = $region40
        $region39: #{tpu_custom_call.1} parent=11 // pred_region
          _
        $region40: #{tpu_custom_call.1} parent=11 // pred_fallthru
          _
        // Predicated region
        $region41: #{tpu_custom_call.1} parent=11 // pred_check
          %p344 = pneg %p280
        $region42: #{tpu_custom_call.1} parent=11 // pred_check_branch
          %346 = sbr.rel (%p344) target = $region44
        $region43: #{tpu_custom_call.1} parent=11 // pred_region
          _
        $region44: #{tpu_custom_call.1} parent=11 // pred_fallthru
          _
      $region12: #{tpu_custom_call.1} parent=5 // pred_fallthru
        _
      %p347 = scmp.lt.s32.totalorder %s20, 2
      // Predicated region
      $region45: #{tpu_custom_call.1} parent=5 // pred_check
        %p348 = pneg %p347
      $region46: #{tpu_custom_call.1} parent=5 // pred_check_branch
        %350 = sbr.rel (%p348) target = $region48
      $region47: #{tpu_custom_call.1} parent=5 // pred_region
        // Predicated region
        $region49: #{tpu_custom_call.1} parent=47 // pred_check
          %p351 = pneg %p54
        $region50: #{tpu_custom_call.1} parent=47 // pred_check_branch
          %353 = sbr.rel (%p351) target = $region52
        $region51: #{tpu_custom_call.1} parent=47 // pred_region
          %p354 = scmp.lt.s32.totalorder %s27, 1
          %s355 = scalar_select %p354, %s27, 1
          %p356 = scmp.lt.s32.totalorder %s28, 0
          %s357 = scalar_select %p356, %s28, 0
          %s358 = sadd.s32 %s357, %s355
          %s359 = smul.addr %s358, 4
          %s360 = scalar_lea.vmem %s0, %s359
        $region52: #{tpu_custom_call.1} parent=47 // pred_fallthru
          _
        // Predicated region
        $region53: #{tpu_custom_call.1} parent=47 // pred_check
          %p361 = pneg %p80
        $region54: #{tpu_custom_call.1} parent=47 // pred_check_branch
          %363 = sbr.rel (%p361) target = $region56
        $region55: #{tpu_custom_call.1} parent=47 // pred_region
          %p364 = scmp.lt.s32.totalorder %s27, 1
          %s365 = scalar_select %p364, %s27, 1
          %s366 = smul.addr %s365, 4
          %s367 = scalar_lea.vmem %s1, %s366
        $region56: #{tpu_custom_call.1} parent=47 // pred_fallthru
          _
        // Predicated region
        $region57: #{tpu_custom_call.1} parent=47 // pred_check
          %p368 = pneg %p106
        $region58: #{tpu_custom_call.1} parent=47 // pred_check_branch
          %370 = sbr.rel (%p368) target = $region60
        $region59: #{tpu_custom_call.1} parent=47 // pred_region
          %p371 = scmp.lt.s32.totalorder %s27, 1
          %s372 = scalar_select %p371, %s27, 1
          %s373 = smul.addr %s372, 4
          %s374 = scalar_lea.vmem %s2, %s373
        $region60: #{tpu_custom_call.1} parent=47 // pred_fallthru
          _
      $region48: #{tpu_custom_call.1} parent=5 // pred_fallthru
        _
      %p375 = scmp.le.s32.totalorder 1, %s20
      %p376 = scmp.lt.s32.totalorder %s20, 3
      %p377 = pnand %p375, %p376
      %p378 = pneg %p377
      // Predicated region
      $region61: #{tpu_custom_call.1} parent=5 // pred_check
        _
      $region62: #{tpu_custom_call.1} parent=5 // pred_check_branch
        %380 = sbr.rel (%p377) target = $region64
      $region63: #{tpu_custom_call.1} parent=5 // pred_region
        %s381 = ssub.s32 %s20, 1
        %p382 = scmp.lt.s32.totalorder %s29, 1
        %s383 = scalar_select %p382, %s29, 1
        %p384 = scmp.lt.s32.totalorder %s30, 0
        %s385 = scalar_select %p384, %s30, 0
        %s386 = sadd.s32 %s385, %s383
        %s387 = smul.addr %s386, 4
        %s388 = scalar_lea.vmem %s0, %s387
        %p389 = pneg %p60
        %p390 = pneg %p57
        %p391 = scmp.lt.s32.totalorder %s29, 1
        %s392 = scalar_select %p391, %s29, 1
        %s393 = smul.addr %s392, 4
        %s394 = scalar_lea.vmem %s1, %s393
        %p395 = pneg %p86
        %p396 = pneg %p83
        %p397 = scmp.lt.s32.totalorder %s29, 1
        %s398 = scalar_select %p397, %s29, 1
        %s399 = smul.addr %s398, 4
        %s400 = scalar_lea.vmem %s2, %s399
        %p401 = pneg %p112
        %p402 = pneg %p109
        %p403 = pneg %p133
        %p404 = pneg %p130
        %p405 = pneg %p154
        %p406 = pneg %p151
        %p407 = pneg %p175
        %p408 = pneg %p172
        %p409 = pneg %p196
        %p410 = pneg %p193
        %p411 = pneg %p217
        %p412 = pneg %p214
        %p413 = pneg %p238
        %p414 = pneg %p235
        %p415 = pneg %p259
        %p416 = pneg %p256
        %p417 = pneg %p280
        %p418 = pneg %p277
        %p419 = pneg %p308
        %p420 = pneg %p305
        %s421 = sand.u32 %s295, 1
        %s422 = scalar_lea.sflag [#allocation5], %s421
        %s423 = sand.u32 %s295, 1
        %s424 = smul.addr %s423, 4
        %s425 = scalar_lea.vmem [#allocation4], %s424
        %p426 = scmp.lt.s32.totalorder %s29, 1
        %s427 = scalar_select %p426, %s29, 1
        %p428 = scmp.lt.s32.totalorder %s30, 0
        %s429 = scalar_select %p428, %s30, 0
        %s430 = sadd.s32 %s429, %s427
        %s431 = smul.addr %s430, 4
        %s432 = scalar_lea.vmem %s0, %s431
        %p433 = scmp.lt.s32.totalorder %s29, 1
        %s434 = scalar_select %p433, %s29, 1
        %s435 = smul.addr %s434, 4
        %s436 = scalar_lea.vmem %s1, %s435
        %p437 = scmp.lt.s32.totalorder %s29, 1
        %s438 = scalar_select %p437, %s29, 1
        %s439 = smul.addr %s438, 4
        %s440 = scalar_lea.vmem %s2, %s439
        %p442 = scmp.eq.s32.totalorder %s30, 0
        // Predicated region
        $region65: #{tpu_custom_call.1} parent=63 // pred_check
          %p443 = pneg %p442
        $region66: #{tpu_custom_call.1} parent=63 // pred_check_branch
          %445 = sbr.rel (%p443) target = $region68
        $region67: #{tpu_custom_call.1} parent=63 // pred_region
          %v446 = vld [vmem:[%s436] sm:$0xf]
          %v447 = vld [vmem:[%s440] sm:$0xf]
          %v448 = vld [vmem:[%s4] sm:$0xf]
          %v449 = vld [vmem:[%s4 + $0x4] sm:$0xf]
          %v450 = vld [vmem:[%s4 + $0x8] sm:$0xf]
          %v451 = vld [vmem:[%s4 + $0xc] sm:$0xf]
          %v452 = vld [vmem:[%s7] sm:$0x1]
          %v453 = vunpack.c.l.bf16 %v452
          %v454 = vperm.slane %v453, 0
          %v459 = vunpack.c.l.b16 %v448
          %v460 = vunpack.c.l.b16 %v449
          %v461 = vunpack.c.l.b16 %v450
          %v462 = vunpack.c.l.b16 %v451
          %v463 = vpack.c.b16 %v460, %v459
          %v464 = vpack.c.b16 %v462, %v461
          %vm467 = vcmask 261120
          %v469 = vsel %vm467, %v446, 0
          %471 = vmatpush.bf16.msra.mxu0 0
          %472 = vmatpush.bf16.msra.mxu0 0
          %473 = vmatpush.bf16.msra.mxu0 0
          %474 = vmatpush.bf16.msra.mxu0 0
          %475 = vmatpush.bf16.msra.mxu0 0
          %476 = vmatpush.bf16.msra.mxu0 0
          %477 = vmatpush.bf16.msra.mxu0 %v464
          %478 = vmatpush.bf16.msra.mxu0 %v463
          %479 = vmatmul.bf16.gmra.mxu0 %v469
          %v480 = vpop.f32.mrf.mxu0
          %v481 = vadd.f32 %v454, %v480
          %v482 = vpop.f32.mrf.mxu0
          %483 = vdwg.mxu0
          %v484 = vpack.c.bf16 %v481, %v481
          %vm485 = vcmask 60416
          %486 = vst.msk [vmem:[#allocation2] sm:$0xf] %vm485, %v484
          %v487 = vld [vmem:[%s5] sm:$0xf]
          %v488 = vld [vmem:[%s5 + $0x4] sm:$0xf]
          %v489 = vld [vmem:[%s5 + $0x8] sm:$0xf]
          %v490 = vld [vmem:[%s5 + $0xc] sm:$0xf]
          %v491 = vld [vmem:[%s8] sm:$0x1]
          %v492 = vunpack.c.l.bf16 %v491
          %v493 = vperm.slane %v492, 0
          %v498 = vunpack.c.l.b16 %v487
          %v499 = vunpack.c.l.b16 %v488
          %v500 = vunpack.c.l.b16 %v489
          %v501 = vunpack.c.l.b16 %v490
          %v502 = vpack.c.b16 %v499, %v498
          %v503 = vpack.c.b16 %v501, %v500
          %v507 = vsel %vm467, %v447, 0
          %509 = vmatpush.bf16.msra.mxu0 0
          %510 = vmatpush.bf16.msra.mxu0 0
          %511 = vmatpush.bf16.msra.mxu0 0
          %512 = vmatpush.bf16.msra.mxu0 0
          %513 = vmatpush.bf16.msra.mxu0 0
          %514 = vmatpush.bf16.msra.mxu0 0
          %515 = vmatpush.bf16.msra.mxu0 %v503
          %516 = vmatpush.bf16.msra.mxu0 %v502
          %517 = vmatmul.bf16.gmra.mxu0 %v507
          %v518 = vpop.f32.mrf.mxu0
          %v519 = vadd.f32 %v493, %v518
          %v520 = vpop.f32.mrf.mxu0
          %521 = vdwg.mxu0
          %v522 = vpack.c.bf16 %v519, %v519
          %523 = vst.msk [vmem:[#allocation3] sm:$0xf] %vm485, %v522
          %s524 = scalar_lea.vmem %s4, 16
          %v525 = vld [vmem:[%s524] sm:$0xf]
          %v526 = vld [vmem:[%s524 + $0x4] sm:$0xf]
          %v527 = vld [vmem:[%s524 + $0x8] sm:$0xf]
          %v528 = vld [vmem:[%s524 + $0xc] sm:$0xf]
          %s529 = scalar_lea.vmem %s7, 1
          %v530 = vld [vmem:[%s529] sm:$0x1]
          %v531 = vunpack.c.l.bf16 %v530
          %v532 = vperm.slane %v531, 0
          %v537 = vunpack.c.l.b16 %v525
          %v538 = vunpack.c.l.b16 %v526
          %v539 = vunpack.c.l.b16 %v527
          %v540 = vunpack.c.l.b16 %v528
          %v541 = vpack.c.b16 %v538, %v537
          %v542 = vpack.c.b16 %v540, %v539
          %545 = vmatpush.bf16.msra.mxu0 0
          %546 = vmatpush.bf16.msra.mxu0 0
          %547 = vmatpush.bf16.msra.mxu0 0
          %548 = vmatpush.bf16.msra.mxu0 0
          %549 = vmatpush.bf16.msra.mxu0 0
          %550 = vmatpush.bf16.msra.mxu0 0
          %551 = vmatpush.bf16.msra.mxu0 %v542
          %552 = vmatpush.bf16.msra.mxu0 %v541
          %553 = vmatmul.bf16.gmra.mxu0 %v469
          %v554 = vpop.f32.mrf.mxu0
          %v555 = vadd.f32 %v532, %v554
          %v556 = vpop.f32.mrf.mxu0
          %557 = vdwg.mxu0
          %v558 = vpack.c.bf16 %v555, %v555
          %s559 = scalar_lea.vmem [#allocation2], 4
          %560 = vst.msk [vmem:[%s559] sm:$0xf] %vm485, %v558
          %s561 = scalar_lea.vmem %s5, 16
          %v562 = vld [vmem:[%s561] sm:$0xf]
          %v563 = vld [vmem:[%s561 + $0x4] sm:$0xf]
          %v564 = vld [vmem:[%s561 + $0x8] sm:$0xf]
          %v565 = vld [vmem:[%s561 + $0xc] sm:$0xf]
          %s566 = scalar_lea.vmem %s8, 1
          %v567 = vld [vmem:[%s566] sm:$0x1]
          %v568 = vunpack.c.l.bf16 %v567
          %v569 = vperm.slane %v568, 0
          %v574 = vunpack.c.l.b16 %v562
          %v575 = vunpack.c.l.b16 %v563
          %v576 = vunpack.c.l.b16 %v564
          %v577 = vunpack.c.l.b16 %v565
          %v578 = vpack.c.b16 %v575, %v574
          %v579 = vpack.c.b16 %v577, %v576
          %582 = vmatpush.bf16.msra.mxu0 0
          %583 = vmatpush.bf16.msra.mxu0 0
          %584 = vmatpush.bf16.msra.mxu0 0
          %585 = vmatpush.bf16.msra.mxu0 0
          %586 = vmatpush.bf16.msra.mxu0 0
          %587 = vmatpush.bf16.msra.mxu0 0
          %588 = vmatpush.bf16.msra.mxu0 %v579
          %589 = vmatpush.bf16.msra.mxu0 %v578
          %590 = vmatmul.bf16.gmra.mxu0 %v507
          %v591 = vpop.f32.mrf.mxu0
          %v592 = vadd.f32 %v569, %v591
          %v593 = vpop.f32.mrf.mxu0
          %594 = vdwg.mxu0
          %v595 = vpack.c.bf16 %v592, %v592
          %s596 = scalar_lea.vmem [#allocation3], 4
          %597 = vst.msk [vmem:[%s596] sm:$0xf] %vm485, %v595
          %s598 = scalar_lea.vmem %s4, 32
          %v599 = vld [vmem:[%s598] sm:$0xf]
          %v600 = vld [vmem:[%s598 + $0x4] sm:$0xf]
          %v601 = vld [vmem:[%s598 + $0x8] sm:$0xf]
          %v602 = vld [vmem:[%s598 + $0xc] sm:$0xf]
          %s603 = scalar_lea.vmem %s7, 2
          %v604 = vld [vmem:[%s603] sm:$0x1]
          %v605 = vunpack.c.l.bf16 %v604
          %v606 = vperm.slane %v605, 0
          %v611 = vunpack.c.l.b16 %v599
          %v612 = vunpack.c.l.b16 %v600
          %v613 = vunpack.c.l.b16 %v601
          %v614 = vunpack.c.l.b16 %v602
          %v615 = vpack.c.b16 %v612, %v611
          %v616 = vpack.c.b16 %v614, %v613
          %619 = vmatpush.bf16.msra.mxu0 0
          %620 = vmatpush.bf16.msra.mxu0 0
          %621 = vmatpush.bf16.msra.mxu0 0
          %622 = vmatpush.bf16.msra.mxu0 0
          %623 = vmatpush.bf16.msra.mxu0 0
          %624 = vmatpush.bf16.msra.mxu0 0
          %625 = vmatpush.bf16.msra.mxu0 %v616
          %626 = vmatpush.bf16.msra.mxu0 %v615
          %627 = vmatmul.bf16.gmra.mxu0 %v469
          %v628 = vpop.f32.mrf.mxu0
          %v629 = vadd.f32 %v606, %v628
          %v630 = vpop.f32.mrf.mxu0
          %631 = vdwg.mxu0
          %v632 = vpack.c.bf16 %v629, %v629
          %s633 = scalar_lea.vmem [#allocation2], 8
          %634 = vst.msk [vmem:[%s633] sm:$0xf] %vm485, %v632
          %s635 = scalar_lea.vmem %s5, 32
          %v636 = vld [vmem:[%s635] sm:$0xf]
          %v637 = vld [vmem:[%s635 + $0x4] sm:$0xf]
          %v638 = vld [vmem:[%s635 + $0x8] sm:$0xf]
          %v639 = vld [vmem:[%s635 + $0xc] sm:$0xf]
          %s640 = scalar_lea.vmem %s8, 2
          %v641 = vld [vmem:[%s640] sm:$0x1]
          %v642 = vunpack.c.l.bf16 %v641
          %v643 = vperm.slane %v642, 0
          %v648 = vunpack.c.l.b16 %v636
          %v649 = vunpack.c.l.b16 %v637
          %v650 = vunpack.c.l.b16 %v638
          %v651 = vunpack.c.l.b16 %v639
          %v652 = vpack.c.b16 %v649, %v648
          %v653 = vpack.c.b16 %v651, %v650
          %656 = vmatpush.bf16.msra.mxu0 0
          %657 = vmatpush.bf16.msra.mxu0 0
          %658 = vmatpush.bf16.msra.mxu0 0
          %659 = vmatpush.bf16.msra.mxu0 0
          %660 = vmatpush.bf16.msra.mxu0 0
          %661 = vmatpush.bf16.msra.mxu0 0
          %662 = vmatpush.bf16.msra.mxu0 %v653
          %663 = vmatpush.bf16.msra.mxu0 %v652
          %664 = vmatmul.bf16.gmra.mxu0 %v507
          %v665 = vpop.f32.mrf.mxu0
          %v666 = vadd.f32 %v643, %v665
          %v667 = vpop.f32.mrf.mxu0
          %668 = vdwg.mxu0
          %v669 = vpack.c.bf16 %v666, %v666
          %s670 = scalar_lea.vmem [#allocation3], 8
          %671 = vst.msk [vmem:[%s670] sm:$0xf] %vm485, %v669
          %s672 = scalar_lea.vmem %s4, 48
          %v673 = vld [vmem:[%s672] sm:$0xf]
          %v674 = vld [vmem:[%s672 + $0x4] sm:$0xf]
          %v675 = vld [vmem:[%s672 + $0x8] sm:$0xf]
          %v676 = vld [vmem:[%s672 + $0xc] sm:$0xf]
          %s677 = scalar_lea.vmem %s7, 3
          %v678 = vld [vmem:[%s677] sm:$0x1]
          %v679 = vunpack.c.l.bf16 %v678
          %v680 = vperm.slane %v679, 0
          %v685 = vunpack.c.l.b16 %v673
          %v686 = vunpack.c.l.b16 %v674
          %v687 = vunpack.c.l.b16 %v675
          %v688 = vunpack.c.l.b16 %v676
          %v689 = vpack.c.b16 %v686, %v685
          %v690 = vpack.c.b16 %v688, %v687
          %693 = vmatpush.bf16.msra.mxu0 0
          %694 = vmatpush.bf16.msra.mxu0 0
          %695 = vmatpush.bf16.msra.mxu0 0
          %696 = vmatpush.bf16.msra.mxu0 0
          %697 = vmatpush.bf16.msra.mxu0 0
          %698 = vmatpush.bf16.msra.mxu0 0
          %699 = vmatpush.bf16.msra.mxu0 %v690
          %700 = vmatpush.bf16.msra.mxu0 %v689
          %701 = vmatmul.bf16.gmra.mxu0 %v469
          %v702 = vpop.f32.mrf.mxu0
          %v703 = vadd.f32 %v680, %v702
          %v704 = vpop.f32.mrf.mxu0
          %705 = vdwg.mxu0
          %v706 = vpack.c.bf16 %v703, %v703
          %s707 = scalar_lea.vmem [#allocation2], 12
          %708 = vst.msk [vmem:[%s707] sm:$0xf] %vm485, %v706
          %s709 = scalar_lea.vmem %s5, 48
          %v710 = vld [vmem:[%s709] sm:$0xf]
          %v711 = vld [vmem:[%s709 + $0x4] sm:$0xf]
          %v712 = vld [vmem:[%s709 + $0x8] sm:$0xf]
          %v713 = vld [vmem:[%s709 + $0xc] sm:$0xf]
          %s714 = scalar_lea.vmem %s8, 3
          %v715 = vld [vmem:[%s714] sm:$0x1]
          %v716 = vunpack.c.l.bf16 %v715
          %v717 = vperm.slane %v716, 0
          %v722 = vunpack.c.l.b16 %v710
          %v723 = vunpack.c.l.b16 %v711
          %v724 = vunpack.c.l.b16 %v712
          %v725 = vunpack.c.l.b16 %v713
          %v726 = vpack.c.b16 %v723, %v722
          %v727 = vpack.c.b16 %v725, %v724
          %730 = vmatpush.bf16.msra.mxu0 0
          %731 = vmatpush.bf16.msra.mxu0 0
          %732 = vmatpush.bf16.msra.mxu0 0
          %733 = vmatpush.bf16.msra.mxu0 0
          %734 = vmatpush.bf16.msra.mxu0 0
          %735 = vmatpush.bf16.msra.mxu0 0
          %736 = vmatpush.bf16.msra.mxu0 %v727
          %737 = vmatpush.bf16.msra.mxu0 %v726
          %738 = vmatmul.bf16.gmra.mxu0 %v507
          %v739 = vpop.f32.mrf.mxu0
          %v740 = vadd.f32 %v717, %v739
          %v741 = vpop.f32.mrf.mxu0
          %742 = vdwg.mxu0
          %v743 = vpack.c.bf16 %v740, %v740
          %s744 = scalar_lea.vmem [#allocation3], 12
          %745 = vst.msk [vmem:[%s744] sm:$0xf] %vm485, %v743
        $region68: #{tpu_custom_call.1} parent=63 // pred_fallthru
          _
        %v746 = vld [vmem:[%s432] sm:$0xf]
        %v747 = vld [vmem:[%s10] sm:$0x1]
        %v748 = vunpack.c.l.bf16 %v747
        %v749 = vperm.slane %v748, 0
        %v750 = vld [vmem:[%s3] sm:$0xf]
        %v751 = vld [vmem:[%s3 + $0x4] sm:$0xf]
        %v752 = vld [vmem:[%s3 + $0x8] sm:$0xf]
        %v753 = vld [vmem:[%s3 + $0xc] sm:$0xf]
        %v754 = vld [vmem:[%s6] sm:$0x1]
        %v755 = vunpack.c.l.bf16 %v754
        %v756 = vperm.slane %v755, 0
        %v761 = vunpack.c.l.b16 %v750
        %v762 = vunpack.c.l.b16 %v751
        %v763 = vunpack.c.l.b16 %v752
        %v764 = vunpack.c.l.b16 %v753
        %v765 = vpack.c.b16 %v762, %v761
        %v766 = vpack.c.b16 %v764, %v763
        %vm769 = vcmask 261120
        %v771 = vsel %vm769, %v746, 0
        %773 = vmatpush.bf16.msra.mxu0 0
        %774 = vmatpush.bf16.msra.mxu0 0
        %775 = vmatpush.bf16.msra.mxu0 0
        %776 = vmatpush.bf16.msra.mxu0 0
        %777 = vmatpush.bf16.msra.mxu0 0
        %778 = vmatpush.bf16.msra.mxu0 0
        %779 = vmatpush.bf16.msra.mxu0 %v766
        %780 = vmatpush.bf16.msra.mxu0 %v765
        %781 = vmatmul.bf16.gmra.mxu0 %v771
        %v782 = vpop.f32.mrf.mxu0
        %v783 = vadd.f32 %v756, %v782
        %v784 = vpop.f32.mrf.mxu0
        %785 = vdwg.mxu0
        %v786 = vmul.f32 %v783, 0.35355338
        %v787 = vpack.c.bf16 %v786, %v786
        %v788 = vld [vmem:[#allocation2] sm:$0xf]
        %v789 = vld [vmem:[#allocation3] sm:$0xf]
        %vm790 = vcmask 64512
        %v792 = vsel %vm790, %v787, 0
        %v795 = vsel %vm790, %v788, 0
        %797 = vmatpush.bf16.xpose.msra.mxu0 0
        %798 = vmatpush.bf16.xpose.msra.mxu0 0
        %799 = vmatpush.bf16.xpose.msra.mxu0 0
        %800 = vmatpush.bf16.xpose.msra.mxu0 0
        %801 = vmatpush.bf16.xpose.msra.mxu0 0
        %802 = vmatpush.bf16.xpose.msra.mxu0 0
        %803 = vmatpush.bf16.xpose.msra.mxu0 0
        %804 = vmatpush.bf16.xpose.msra.mxu0 %v795
        %805 = vmatmul.bf16.gmra.mxu0 %v792
        %v806 = vpop.f32.mrf.mxu0
        %v807 = vadd.f32 0.0, %v806
        %v808 = vpop.f32.mrf.mxu0
        %809 = vdwg.mxu0
        %v810 = vsel %vm790, %v807, -inf
        %811 = vmax.xlane.f32.xlu0 %v810
        %v812 = vpop.xlane.xlu0 %811
        %v813 = vsub.f32 %v807, %v812
        %v814 = vmul.f32 %v813, 1.442695
        %v815 = vpow.pop %v814
        %v816 = vsel %vm790, %v815, 0.0
        %817 = vadd.xlane.f32.xlu0 %v816
        %v818 = vpop.xlane.xlu0 %817
        %v819 = vpack.c.bf16 %v815, %v815
        %v821 = vsel %vm790, %v819, 0
        %vm823 = vcmask 1043456
        %v825 = vsel %vm823, %v789, 0
        %827 = vmatpush.bf16.msra.mxu0 0
        %828 = vmatpush.bf16.msra.mxu0 0
        %829 = vmatpush.bf16.msra.mxu0 0
        %830 = vmatpush.bf16.msra.mxu0 0
        %831 = vmatpush.bf16.msra.mxu0 0
        %832 = vmatpush.bf16.msra.mxu0 0
        %833 = vmatpush.bf16.msra.mxu0 0
        %834 = vmatpush.bf16.msra.mxu0 %v825
        %835 = vmatmul.bf16.gmra.mxu0 %v821
        %v836 = vpop.f32.mrf.mxu0
        %v837 = vadd.f32 0.0, %v836
        %v838 = vpop.f32.mrf.mxu0
        %839 = vdwg.mxu0
        %v840 = vrcp.pop %v818
        %v841 = vmul.f32 %v837, %v840
        %v842 = vpack.c.bf16 %v841, %v841
        %v843 = vld [vmem:[%s9] sm:$0xf]
        %v845 = vsel %vm790, %v842, 0
        %v848 = vsel %vm823, %v843, 0
        %850 = vmatpush.bf16.msra.mxu0 0
        %851 = vmatpush.bf16.msra.mxu0 0
        %852 = vmatpush.bf16.msra.mxu0 0
        %853 = vmatpush.bf16.msra.mxu0 0
        %854 = vmatpush.bf16.msra.mxu0 0
        %855 = vmatpush.bf16.msra.mxu0 0
        %856 = vmatpush.bf16.msra.mxu0 0
        %857 = vmatpush.bf16.msra.mxu0 %v848
        %858 = vmatmul.bf16.gmra.mxu0 %v845
        %v859 = vpop.f32.mrf.mxu0
        %v860 = vadd.f32 0.0, %v859
        %v861 = vpop.f32.mrf.mxu0
        %862 = vdwg.mxu0
        %v863 = vadd.f32 %v749, %v860
        %s864 = scalar_lea.vmem %s3, 16
        %v865 = vld [vmem:[%s864] sm:$0xf]
        %v866 = vld [vmem:[%s864 + $0x4] sm:$0xf]
        %v867 = vld [vmem:[%s864 + $0x8] sm:$0xf]
        %v868 = vld [vmem:[%s864 + $0xc] sm:$0xf]
        %s869 = scalar_lea.vmem %s6, 1
        %v870 = vld [vmem:[%s869] sm:$0x1]
        %v871 = vunpack.c.l.bf16 %v870
        %v872 = vperm.slane %v871, 0
        %v877 = vunpack.c.l.b16 %v865
        %v878 = vunpack.c.l.b16 %v866
        %v879 = vunpack.c.l.b16 %v867
        %v880 = vunpack.c.l.b16 %v868
        %v881 = vpack.c.b16 %v878, %v877
        %v882 = vpack.c.b16 %v880, %v879
        %885 = vmatpush.bf16.msra.mxu0 0
        %886 = vmatpush.bf16.msra.mxu0 0
        %887 = vmatpush.bf16.msra.mxu0 0
        %888 = vmatpush.bf16.msra.mxu0 0
        %889 = vmatpush.bf16.msra.mxu0 0
        %890 = vmatpush.bf16.msra.mxu0 0
        %891 = vmatpush.bf16.msra.mxu0 %v882
        %892 = vmatpush.bf16.msra.mxu0 %v881
        %893 = vmatmul.bf16.gmra.mxu0 %v771
        %v894 = vpop.f32.mrf.mxu0
        %v895 = vadd.f32 %v872, %v894
        %v896 = vpop.f32.mrf.mxu0
        %897 = vdwg.mxu0
        %v898 = vmul.f32 %v895, 0.35355338
        %v899 = vpack.c.bf16 %v898, %v898
        %s900 = scalar_lea.vmem [#allocation2], 4
        %v901 = vld [vmem:[%s900] sm:$0xf]
        %s902 = scalar_lea.vmem [#allocation3], 4
        %v903 = vld [vmem:[%s902] sm:$0xf]
        %v905 = vsel %vm790, %v899, 0
        %v908 = vsel %vm790, %v901, 0
        %910 = vmatpush.bf16.xpose.msra.mxu0 0
        %911 = vmatpush.bf16.xpose.msra.mxu0 0
        %912 = vmatpush.bf16.xpose.msra.mxu0 0
        %913 = vmatpush.bf16.xpose.msra.mxu0 0
        %914 = vmatpush.bf16.xpose.msra.mxu0 0
        %915 = vmatpush.bf16.xpose.msra.mxu0 0
        %916 = vmatpush.bf16.xpose.msra.mxu0 0
        %917 = vmatpush.bf16.xpose.msra.mxu0 %v908
        %918 = vmatmul.bf16.gmra.mxu0 %v905
        %v919 = vpop.f32.mrf.mxu0
        %v920 = vadd.f32 0.0, %v919
        %v921 = vpop.f32.mrf.mxu0
        %922 = vdwg.mxu0
        %v923 = vsel %vm790, %v920, -inf
        %924 = vmax.xlane.f32.xlu0 %v923
        %v925 = vpop.xlane.xlu0 %924
        %v926 = vsub.f32 %v920, %v925
        %v927 = vmul.f32 %v926, 1.442695
        %v928 = vpow.pop %v927
        %v929 = vsel %vm790, %v928, 0.0
        %930 = vadd.xlane.f32.xlu0 %v929
        %v931 = vpop.xlane.xlu0 %930
        %v932 = vpack.c.bf16 %v928, %v928
        %v934 = vsel %vm790, %v932, 0
        %v937 = vsel %vm823, %v903, 0
        %939 = vmatpush.bf16.msra.mxu0 0
        %940 = vmatpush.bf16.msra.mxu0 0
        %941 = vmatpush.bf16.msra.mxu0 0
        %942 = vmatpush.bf16.msra.mxu0 0
        %943 = vmatpush.bf16.msra.mxu0 0
        %944 = vmatpush.bf16.msra.mxu0 0
        %945 = vmatpush.bf16.msra.mxu0 0
        %946 = vmatpush.bf16.msra.mxu0 %v937
        %947 = vmatmul.bf16.gmra.mxu0 %v934
        %v948 = vpop.f32.mrf.mxu0
        %v949 = vadd.f32 0.0, %v948
        %v950 = vpop.f32.mrf.mxu0
        %951 = vdwg.mxu0
        %v952 = vrcp.pop %v931
        %v953 = vmul.f32 %v949, %v952
        %v954 = vpack.c.bf16 %v953, %v953
        %s955 = scalar_lea.vmem %s9, 4
        %v956 = vld [vmem:[%s955] sm:$0xf]
        %v958 = vsel %vm790, %v954, 0
        %v961 = vsel %vm823, %v956, 0
        %963 = vmatpush.bf16.msra.mxu0 0
        %964 = vmatpush.bf16.msra.mxu0 0
        %965 = vmatpush.bf16.msra.mxu0 0
        %966 = vmatpush.bf16.msra.mxu0 0
        %967 = vmatpush.bf16.msra.mxu0 0
        %968 = vmatpush.bf16.msra.mxu0 0
        %969 = vmatpush.bf16.msra.mxu0 0
        %970 = vmatpush.bf16.msra.mxu0 %v961
        %971 = vmatmul.bf16.gmra.mxu0 %v958
        %v972 = vpop.f32.mrf.mxu0
        %v973 = vadd.f32 0.0, %v972
        %v974 = vpop.f32.mrf.mxu0
        %975 = vdwg.mxu0
        %v976 = vadd.f32 %v863, %v973
        %s977 = scalar_lea.vmem %s3, 32
        %v978 = vld [vmem:[%s977] sm:$0xf]
        %v979 = vld [vmem:[%s977 + $0x4] sm:$0xf]
        %v980 = vld [vmem:[%s977 + $0x8] sm:$0xf]
        %v981 = vld [vmem:[%s977 + $0xc] sm:$0xf]
        %s982 = scalar_lea.vmem %s6, 2
        %v983 = vld [vmem:[%s982] sm:$0x1]
        %v984 = vunpack.c.l.bf16 %v983
        %v985 = vperm.slane %v984, 0
        %v990 = vunpack.c.l.b16 %v978
        %v991 = vunpack.c.l.b16 %v979
        %v992 = vunpack.c.l.b16 %v980
        %v993 = vunpack.c.l.b16 %v981
        %v994 = vpack.c.b16 %v991, %v990
        %v995 = vpack.c.b16 %v993, %v992
        %998 = vmatpush.bf16.msra.mxu0 0
        %999 = vmatpush.bf16.msra.mxu0 0
        %1000 = vmatpush.bf16.msra.mxu0 0
        %1001 = vmatpush.bf16.msra.mxu0 0
        %1002 = vmatpush.bf16.msra.mxu0 0
        %1003 = vmatpush.bf16.msra.mxu0 0
        %1004 = vmatpush.bf16.msra.mxu0 %v995
        %1005 = vmatpush.bf16.msra.mxu0 %v994
        %1006 = vmatmul.bf16.gmra.mxu0 %v771
        %v1007 = vpop.f32.mrf.mxu0
        %v1008 = vadd.f32 %v985, %v1007
        %v1009 = vpop.f32.mrf.mxu0
        %1010 = vdwg.mxu0
        %v1011 = vmul.f32 %v1008, 0.35355338
        %v1012 = vpack.c.bf16 %v1011, %v1011
        %s1013 = scalar_lea.vmem [#allocation2], 8
        %v1014 = vld [vmem:[%s1013] sm:$0xf]
        %s1015 = scalar_lea.vmem [#allocation3], 8
        %v1016 = vld [vmem:[%s1015] sm:$0xf]
        %v1018 = vsel %vm790, %v1012, 0
        %v1021 = vsel %vm790, %v1014, 0
        %1023 = vmatpush.bf16.xpose.msra.mxu0 0
        %1024 = vmatpush.bf16.xpose.msra.mxu0 0
        %1025 = vmatpush.bf16.xpose.msra.mxu0 0
        %1026 = vmatpush.bf16.xpose.msra.mxu0 0
        %1027 = vmatpush.bf16.xpose.msra.mxu0 0
        %1028 = vmatpush.bf16.xpose.msra.mxu0 0
        %1029 = vmatpush.bf16.xpose.msra.mxu0 0
        %1030 = vmatpush.bf16.xpose.msra.mxu0 %v1021
        %1031 = vmatmul.bf16.gmra.mxu0 %v1018
        %v1032 = vpop.f32.mrf.mxu0
        %v1033 = vadd.f32 0.0, %v1032
        %v1034 = vpop.f32.mrf.mxu0
        %1035 = vdwg.mxu0
        %v1036 = vsel %vm790, %v1033, -inf
        %1037 = vmax.xlane.f32.xlu0 %v1036
        %v1038 = vpop.xlane.xlu0 %1037
        %v1039 = vsub.f32 %v1033, %v1038
        %v1040 = vmul.f32 %v1039, 1.442695
        %v1041 = vpow.pop %v1040
        %v1042 = vsel %vm790, %v1041, 0.0
        %1043 = vadd.xlane.f32.xlu0 %v1042
        %v1044 = vpop.xlane.xlu0 %1043
        %v1045 = vpack.c.bf16 %v1041, %v1041
        %v1047 = vsel %vm790, %v1045, 0
        %v1050 = vsel %vm823, %v1016, 0
        %1052 = vmatpush.bf16.msra.mxu0 0
        %1053 = vmatpush.bf16.msra.mxu0 0
        %1054 = vmatpush.bf16.msra.mxu0 0
        %1055 = vmatpush.bf16.msra.mxu0 0
        %1056 = vmatpush.bf16.msra.mxu0 0
        %1057 = vmatpush.bf16.msra.mxu0 0
        %1058 = vmatpush.bf16.msra.mxu0 0
        %1059 = vmatpush.bf16.msra.mxu0 %v1050
        %1060 = vmatmul.bf16.gmra.mxu0 %v1047
        %v1061 = vpop.f32.mrf.mxu0
        %v1062 = vadd.f32 0.0, %v1061
        %v1063 = vpop.f32.mrf.mxu0
        %1064 = vdwg.mxu0
        %v1065 = vrcp.pop %v1044
        %v1066 = vmul.f32 %v1062, %v1065
        %v1067 = vpack.c.bf16 %v1066, %v1066
        %s1068 = scalar_lea.vmem %s9, 8
        %v1069 = vld [vmem:[%s1068] sm:$0xf]
        %v1071 = vsel %vm790, %v1067, 0
        %v1074 = vsel %vm823, %v1069, 0
        %1076 = vmatpush.bf16.msra.mxu0 0
        %1077 = vmatpush.bf16.msra.mxu0 0
        %1078 = vmatpush.bf16.msra.mxu0 0
        %1079 = vmatpush.bf16.msra.mxu0 0
        %1080 = vmatpush.bf16.msra.mxu0 0
        %1081 = vmatpush.bf16.msra.mxu0 0
        %1082 = vmatpush.bf16.msra.mxu0 0
        %1083 = vmatpush.bf16.msra.mxu0 %v1074
        %1084 = vmatmul.bf16.gmra.mxu0 %v1071
        %v1085 = vpop.f32.mrf.mxu0
        %v1086 = vadd.f32 0.0, %v1085
        %v1087 = vpop.f32.mrf.mxu0
        %1088 = vdwg.mxu0
        %v1089 = vadd.f32 %v976, %v1086
        %s1090 = scalar_lea.vmem %s3, 48
        %v1091 = vld [vmem:[%s1090] sm:$0xf]
        %v1092 = vld [vmem:[%s1090 + $0x4] sm:$0xf]
        %v1093 = vld [vmem:[%s1090 + $0x8] sm:$0xf]
        %v1094 = vld [vmem:[%s1090 + $0xc] sm:$0xf]
        %s1095 = scalar_lea.vmem %s6, 3
        %v1096 = vld [vmem:[%s1095] sm:$0x1]
        %v1097 = vunpack.c.l.bf16 %v1096
        %v1098 = vperm.slane %v1097, 0
        %v1103 = vunpack.c.l.b16 %v1091
        %v1104 = vunpack.c.l.b16 %v1092
        %v1105 = vunpack.c.l.b16 %v1093
        %v1106 = vunpack.c.l.b16 %v1094
        %v1107 = vpack.c.b16 %v1104, %v1103
        %v1108 = vpack.c.b16 %v1106, %v1105
        %1111 = vmatpush.bf16.msra.mxu0 0
        %1112 = vmatpush.bf16.msra.mxu0 0
        %1113 = vmatpush.bf16.msra.mxu0 0
        %1114 = vmatpush.bf16.msra.mxu0 0
        %1115 = vmatpush.bf16.msra.mxu0 0
        %1116 = vmatpush.bf16.msra.mxu0 0
        %1117 = vmatpush.bf16.msra.mxu0 %v1108
        %1118 = vmatpush.bf16.msra.mxu0 %v1107
        %1119 = vmatmul.bf16.gmra.mxu0 %v771
        %v1120 = vpop.f32.mrf.mxu0
        %v1121 = vadd.f32 %v1098, %v1120
        %v1122 = vpop.f32.mrf.mxu0
        %1123 = vdwg.mxu0
        %v1124 = vmul.f32 %v1121, 0.35355338
        %v1125 = vpack.c.bf16 %v1124, %v1124
        %s1126 = scalar_lea.vmem [#allocation2], 12
        %v1127 = vld [vmem:[%s1126] sm:$0xf]
        %s1128 = scalar_lea.vmem [#allocation3], 12
        %v1129 = vld [vmem:[%s1128] sm:$0xf]
        %v1131 = vsel %vm790, %v1125, 0
        %v1134 = vsel %vm790, %v1127, 0
        %1136 = vmatpush.bf16.xpose.msra.mxu0 0
        %1137 = vmatpush.bf16.xpose.msra.mxu0 0
        %1138 = vmatpush.bf16.xpose.msra.mxu0 0
        %1139 = vmatpush.bf16.xpose.msra.mxu0 0
        %1140 = vmatpush.bf16.xpose.msra.mxu0 0
        %1141 = vmatpush.bf16.xpose.msra.mxu0 0
        %1142 = vmatpush.bf16.xpose.msra.mxu0 0
        %1143 = vmatpush.bf16.xpose.msra.mxu0 %v1134
        %1144 = vmatmul.bf16.gmra.mxu0 %v1131
        %v1145 = vpop.f32.mrf.mxu0
        %v1146 = vadd.f32 0.0, %v1145
        %v1147 = vpop.f32.mrf.mxu0
        %1148 = vdwg.mxu0
        %v1149 = vsel %vm790, %v1146, -inf
        %1150 = vmax.xlane.f32.xlu0 %v1149
        %v1151 = vpop.xlane.xlu0 %1150
        %v1152 = vsub.f32 %v1146, %v1151
        %v1153 = vmul.f32 %v1152, 1.442695
        %v1154 = vpow.pop %v1153
        %v1155 = vsel %vm790, %v1154, 0.0
        %1156 = vadd.xlane.f32.xlu0 %v1155
        %v1157 = vpop.xlane.xlu0 %1156
        %v1158 = vpack.c.bf16 %v1154, %v1154
        %v1160 = vsel %vm790, %v1158, 0
        %v1163 = vsel %vm823, %v1129, 0
        %1165 = vmatpush.bf16.msra.mxu0 0
        %1166 = vmatpush.bf16.msra.mxu0 0
        %1167 = vmatpush.bf16.msra.mxu0 0
        %1168 = vmatpush.bf16.msra.mxu0 0
        %1169 = vmatpush.bf16.msra.mxu0 0
        %1170 = vmatpush.bf16.msra.mxu0 0
        %1171 = vmatpush.bf16.msra.mxu0 0
        %1172 = vmatpush.bf16.msra.mxu0 %v1163
        %1173 = vmatmul.bf16.gmra.mxu0 %v1160
        %v1174 = vpop.f32.mrf.mxu0
        %v1175 = vadd.f32 0.0, %v1174
        %v1176 = vpop.f32.mrf.mxu0
        %1177 = vdwg.mxu0
        %v1178 = vrcp.pop %v1157
        %v1179 = vmul.f32 %v1175, %v1178
        %v1180 = vpack.c.bf16 %v1179, %v1179
        %s1181 = scalar_lea.vmem %s9, 12
        %v1182 = vld [vmem:[%s1181] sm:$0xf]
        %v1184 = vsel %vm790, %v1180, 0
        %v1187 = vsel %vm823, %v1182, 0
        %1189 = vmatpush.bf16.msra.mxu0 0
        %1190 = vmatpush.bf16.msra.mxu0 0
        %1191 = vmatpush.bf16.msra.mxu0 0
        %1192 = vmatpush.bf16.msra.mxu0 0
        %1193 = vmatpush.bf16.msra.mxu0 0
        %1194 = vmatpush.bf16.msra.mxu0 0
        %1195 = vmatpush.bf16.msra.mxu0 0
        %1196 = vmatpush.bf16.msra.mxu0 %v1187
        %1197 = vmatmul.bf16.gmra.mxu0 %v1184
        %v1198 = vpop.f32.mrf.mxu0
        %v1199 = vadd.f32 0.0, %v1198
        %v1200 = vpop.f32.mrf.mxu0
        %1201 = vdwg.mxu0
        %v1202 = vadd.f32 %v1089, %v1199
        %v1203 = vpack.c.bf16 %v1202, %v1202
        %vm1204 = vcmask 257024
        %1205 = vst.msk [vmem:[%s425] sm:$0xf] %vm1204, %v1203
        %s1206 = sand.u32 %s295, 1
        %s1207 = scalar_lea.sflag [#allocation5], %s1206
        %s1208 = sand.u32 %s295, 1
        %s1209 = smul.addr %s1208, 4
        %s1210 = scalar_lea.vmem [#allocation4], %s1209
        // Predicated region
        $region69: #{tpu_custom_call.1} parent=63 // pred_check
          %p1211 = pneg %p305
        $region70: #{tpu_custom_call.1} parent=63 // pred_check_branch
          %1213 = sbr.rel (%p1211) target = $region72
        $region71: #{tpu_custom_call.1} parent=63 // pred_region
          %1215 = vsyncadd %s1207, 0
          %s1216 = sadd.s32 %s30, %s29
          %s1217 = smul.addr %s1216, 4
          %s1218 = scalar_lea.hbm %s11, %s1217
          %s1220 = sshll.u32 %s1210, 4
          %s1221 = int_to_ptr.vmem [resolvable:$true] %s1220
          %s1222 = sshll.u32 %s1218, 4
          %s1223 = int_to_ptr.hbm [resolvable:$true] %s1222
          %1225 = dma.vmem_to_hbm [thread:$0]  %s1221, 64, %s1223, %s1207
        $region72: #{tpu_custom_call.1} parent=63 // pred_fallthru
          _
      $region64: #{tpu_custom_call.1} parent=5 // pred_fallthru
        _
      %p1226 = scmp.le.s32.totalorder 2, %s20
      // Predicated region
      $region73: #{tpu_custom_call.1} parent=5 // pred_check
        %p1227 = pneg %p1226
      $region74: #{tpu_custom_call.1} parent=5 // pred_check_branch
        %1229 = sbr.rel (%p1227) target = $region76
      $region75: #{tpu_custom_call.1} parent=5 // pred_region
        %s1230 = ssub.s32 %s20, 2
        // Predicated region
        $region77: #{tpu_custom_call.1} parent=75 // pred_check
          %p1231 = pneg %p311
        $region78: #{tpu_custom_call.1} parent=75 // pred_check_branch
          %1233 = sbr.rel (%p1231) target = $region80
        $region79: #{tpu_custom_call.1} parent=75 // pred_region
          %s1234 = sand.u32 %s296, 1
          %s1235 = scalar_lea.sflag [#allocation5], %s1234
          %s1236 = sand.u32 %s296, 1
          %s1237 = smul.addr %s1236, 4
          %s1238 = scalar_lea.vmem [#allocation4], %s1237
          %1240 = dma.done %s1235, 64
        $region80: #{tpu_custom_call.1} parent=75 // pred_fallthru
          _
      $region76: #{tpu_custom_call.1} parent=5 // pred_fallthru
        _
    $region6: #{tpu_custom_call.1} parent=1 // loop_footer
      %s24 = sadd.s32 1, %s20
    $region7: #{tpu_custom_call.1} parent=1 // loop_footer_branch
      %19 = sbr.rel target = $region3
    $region8: #{tpu_custom_call.1} parent=1 // loop_exit
      _
    %1241 = vsyncpa [#allocation5], 1
    %s1242 = scalar_lea.sflag [#allocation5], 1
    %1243 = vsyncpa %s1242, 1

</llo_original>
